<compile_context>
chip_gen: v7x
topology: tpu7x:2x2x1
jax: 0.10.0
libtpu: 0.0.40
codegen_flags: <defaults>
</compile_context>

<pallas_src>
import functools

import jax
import jax.numpy as jnp
from jax.experimental import pallas as pl
from jax.experimental.pallas import tpu as pltpu


def _round_up(x, m):
    return ((x + m - 1) // m) * m


# ----------------------------------------------------------------------------
# Pallas kernel: fused ReLU -> conv (k*k shifted matmuls) -> BN shift
# ----------------------------------------------------------------------------
def _relu_conv_bn_kernel(x_ref, w_ref, shift_ref, o_ref, *, taps, w_pad, lc):
    # x_ref:     (C_in, Lp)        one zero-padded image, flattened row-major
    #                              over (H_pad, W_pad), zero tail-padded to Lp.
    # w_ref:     (k*k, C_out, C_in) per-tap weights with BN scale pre-folded.
    # shift_ref: (C_out, 1)        BN shift = beta - mean * scale.
    # o_ref:     (C_out, Lc)       dense (stride-1) conv output, flat spatial
    #                              positions on the lane axis (Lc % 128 == 0).
    x = jnp.maximum(x_ref[...], 0.0)                      # SReLU, once per tile
    # Seed the accumulator with the BN shift (lane-broadcast of (C_out, 1)).
    acc = jnp.broadcast_to(shift_ref[...], o_ref.shape).astype(jnp.float32)
    for t, (ki, kj) in enumerate(taps):                   # SSTPConv2d as k*k GEMMs
        off = ki * w_pad + kj                             # static shift in flat space
        acc = acc + jnp.dot(w_ref[t], x[:, off:off + lc],
                            preferred_element_type=jnp.float32)
    o_ref[...] = acc.astype(o_ref.dtype)                  # SBatchNorm2d (shift folded)


def _fused_relu_conv_bn(x, w_stack, shift, *, k, stride, padding):
    N, C_in, H, W = x.shape
    T, C_out, _ = w_stack.shape
    H_pad, W_pad = H + 2 * padding, W + 2 * padding
    H_dense, W_dense = H_pad - k + 1, W_pad - k + 1       # stride-1 output extents
    Ho = (H + 2 * padding - k) // stride + 1
    Wo = (W + 2 * padding - k) // stride + 1

    # The kernel computes Lc dense output positions per image (lane-aligned);
    # tap reads reach at most max_off past them -> pad the input stream to Lp.
    Lc = _round_up(H_dense * W_pad, 128)
    max_off = (k - 1) * W_pad + (k - 1)
    Lp = _round_up(Lc + max_off, 128)

    # (N, C_in, H, W) -> zero-pad spatially -> flatten -> zero tail-pad to Lp.
    x_flat = jnp.pad(x, ((0, 0), (0, 0), (padding, padding), (padding, padding)))
    x_flat = x_flat.reshape(N, C_in, H_pad * W_pad)
    x_flat = jnp.pad(x_flat, ((0, 0), (0, 0), (0, Lp - H_pad * W_pad)))

    taps = tuple((ki, kj) for ki in range(k) for kj in range(k))
    kernel = functools.partial(_relu_conv_bn_kernel,
                               taps=taps, w_pad=W_pad, lc=Lc)

    out_flat = pl.pallas_call(
        kernel,
        out_shape=jax.ShapeDtypeStruct((N, C_out, Lc), jnp.float32),
        grid_spec=pltpu.PrefetchScalarGridSpec(
            num_scalar_prefetch=0,
            grid=(N,),                                     # one image per step
            in_specs=[
                pl.BlockSpec((None, C_in, Lp), lambda n: (n, 0, 0)),
                pl.BlockSpec((T, C_out, C_in), lambda n: (0, 0, 0)),
                pl.BlockSpec((C_out, 1), lambda n: (0, 0)),
            ],
            out_specs=pl.BlockSpec((None, C_out, Lc), lambda n: (n, 0, 0)),
        ),
        compiler_params=pltpu.CompilerParams(
            dimension_semantics=("parallel",)),
    )(x_flat, w_stack, shift)

    # Crop: flat -> (H_dense, W_pad) grid; drop garbage columns (tap reads that
    # wrapped past a row end only land on cropped positions) and apply stride.
    dense = out_flat[:, :, :H_dense * W_pad].reshape(N, C_out, H_dense, W_pad)
    return dense[:, :, ::stride, ::stride][:, :, :Ho, :Wo]


# ----------------------------------------------------------------------------
# ReLUConvBN module (forward only, inference-mode BN)
# ----------------------------------------------------------------------------
class ReLUConvBN:
    def __init__(self, C_in, C_out, kernel_size, stride, padding,
                 affine=True, key=None, eps=1e-5):
        self.C_in, self.C_out = C_in, C_out
        self.k, self.stride, self.padding = kernel_size, stride, padding
        self.eps = eps
        key = jax.random.PRNGKey(0) if key is None else key
        kw_key, g_key, b_key = jax.random.split(key, 3)
        # Conv2d weight, PyTorch layout (C_out, C_in, kh, kw), bias=False.
        self.weight = jax.random.normal(
            kw_key, (C_out, C_in, kernel_size, kernel_size), jnp.float32) * 0.1
        # BatchNorm2d params / running stats (inference semantics).
        if affine:
            self.gamma = 1.0 + 0.1 * jax.random.normal(g_key, (C_out,), jnp.float32)
            self.beta = 0.1 * jax.random.normal(b_key, (C_out,), jnp.float32)
        else:
            self.gamma = jnp.ones((C_out,), jnp.float32)
            self.beta = jnp.zeros((C_out,), jnp.float32)
        self.running_mean = jnp.zeros((C_out,), jnp.float32)
        self.running_var = jnp.ones((C_out,), jnp.float32)

    @functools.partial(jax.jit, static_argnums=0)
    def __call__(self, x):
        # x: (N, C_in, H, W) NCHW  ->  (N, C_out, Ho, Wo)
        scale = self.gamma / jnp.sqrt(self.running_var + self.eps)
        shift = self.beta - self.running_mean * scale
        # Fold BN scale into the conv weights (exact in inference mode).
        w_fold = self.weight * scale[:, None, None, None]
        # (C_out, C_in, kh, kw) -> (kh*kw, C_out, C_in), tap order ki*kw + kj.
        w_stack = jnp.transpose(w_fold, (2, 3, 0, 1)).reshape(
            self.k * self.k, self.C_out, self.C_in)
        return _fused_relu_conv_bn(x, w_stack, shift.reshape(self.C_out, 1),
                                   k=self.k, stride=self.stride,
                                   padding=self.padding)


# ----------------------------------------------------------------------------
def _reference(module, x):
    # Pure-JAX reference: relu -> conv -> bn (inference).
    x = jnp.maximum(x, 0.0)
    y = jax.lax.conv_general_dilated(
        x, module.weight,
        window_strides=(module.stride, module.stride),
        padding=[(module.padding, module.padding)] * 2,
        dimension_numbers=("NCHW", "OIHW", "NCHW"))
    scale = module.gamma / jnp.sqrt(module.running_var + module.eps)
    shift = module.beta - module.running_mean * scale
    return y * scale[None, :, None, None] + shift[None, :, None, None]


def _check(mod, x, name):
    out = jax.block_until_ready(mod(x))
    ref = jax.block_until_ready(_reference(mod, x))
    assert out.shape == ref.shape, (name, out.shape, ref.shape)
    err = float(jnp.max(jnp.abs(out - ref)))
    assert jnp.allclose(out, ref, atol=1e-3, rtol=1e-3), (name, err)
    return out


if __name__ == "__main__":
    key = jax.random.PRNGKey(0)
    x_key, p_key, p2_key, p3_key = jax.random.split(key, 4)

    N, C_in, H, W = 2, 4, 16, 16
    x = jax.random.normal(x_key, (N, C_in, H, W), jnp.float32)

    # Main config: 3x3, stride 1, padding 1 (same as the original spec test).
    mod = ReLUConvBN(C_in, 8, kernel_size=3, stride=1, padding=1,
                     affine=True, key=p_key)
    out = _check(mod, x, "k3s1p1")
    assert out.shape == (N, 8, H, W), out.shape

    # Extra coverage: 1x1 conv and strided 3x3.
    _check(ReLUConvBN(C_in, 8, kernel_size=1, stride=1, padding=0,
                      affine=True, key=p2_key), x, "k1s1p0")
    _check(ReLUConvBN(C_in, 8, kernel_size=3, stride=2, padding=1,
                      affine=False, key=p3_key), x, "k3s2p1")

    print("KERNEL_OK")
</pallas_src>

<mosaic_0001>
module attributes {stable_mosaic.version = 11 : i64} {
  func.func @_relu_conv_bn_kernel(%arg0: i32, %arg1: memref<1x4x512xf32, #tpu.memory_space<vmem>>, %arg2: memref<9x8x4xf32, #tpu.memory_space<vmem>>, %arg3: memref<8x1xf32, #tpu.memory_space<vmem>>, %arg4: memref<1x8x384xf32, #tpu.memory_space<vmem>>) attributes {dimension_semantics = [#tpu.dimension_semantics<parallel>], iteration_bounds = array<i64: 2>, scalar_prefetch = 0 : i64, scratch_operands = 0 : i64, tpu.core_type = #tpu.core_type<tc>, window_params = [{transform_indices = @transform_0, window_bounds = array<i64: 1, 4, 512>}, {pipeline_mode = #tpu.pipeline_mode<synchronous>, transform_indices = @transform_1, window_bounds = array<i64: 9, 8, 4>}, {pipeline_mode = #tpu.pipeline_mode<synchronous>, transform_indices = @transform_2, window_bounds = array<i64: 8, 1>}, {transform_indices = @transform_3, window_bounds = array<i64: 1, 8, 384>}]} {
    %c0 = arith.constant 0 : index
    %c0_0 = arith.constant 0 : index
    %c0_1 = arith.constant 0 : index
    %0 = vector.load %arg1[%c0, %c0_0, %c0_1] : memref<1x4x512xf32, #tpu.memory_space<vmem>>, vector<1x4x512xf32>
    %1 = vector.shape_cast %0 : vector<1x4x512xf32> to vector<4x512xf32>
    %cst = arith.constant 0.000000e+00 : f32
    %2 = vector.broadcast %cst : f32 to vector<4x512xf32>
    %3 = arith.maximumf %1, %2 : vector<4x512xf32>
    %c0_2 = arith.constant 0 : index
    %c0_3 = arith.constant 0 : index
    %4 = vector.load %arg3[%c0_2, %c0_3] : memref<8x1xf32, #tpu.memory_space<vmem>>, vector<8x1xf32>
    %5 = vector.shape_cast %4 : vector<8x1xf32> to vector<8x1xf32>
    %6 = vector.broadcast %5 : vector<8x1xf32> to vector<8x384xf32>
    %c0_4 = arith.constant 0 : index
    %c0_5 = arith.constant 0 : index
    %c0_6 = arith.constant 0 : index
    %7 = vector.load %arg2[%c0_4, %c0_5, %c0_6] : memref<9x8x4xf32, #tpu.memory_space<vmem>>, vector<1x8x4xf32>
    %8 = vector.shape_cast %7 : vector<1x8x4xf32> to vector<8x4xf32>
    %9 = vector.extract_strided_slice %3 {offsets = [0, 0], sizes = [4, 384], strides = [1, 1]} : vector<4x512xf32> to vector<4x384xf32>
    %cst_7 = arith.constant dense<0.000000e+00> : vector<8x384xf32>
    %10 = tpu.matmul %8, %9, %cst_7 {dimension_numbers = #tpu.dot_dimension_numbers<[1], [0], [0], [1], [0, 0, 1, 1], [], []>} : vector<8x4xf32>, vector<4x384xf32>, vector<8x384xf32> -> vector<8x384xf32>
    %11 = arith.addf %6, %10 : vector<8x384xf32>
    %c1 = arith.constant 1 : index
    %c0_8 = arith.constant 0 : index
    %c0_9 = arith.constant 0 : index
    %12 = vector.load %arg2[%c1, %c0_8, %c0_9] : memref<9x8x4xf32, #tpu.memory_space<vmem>>, vector<1x8x4xf32>
    %13 = vector.shape_cast %12 : vector<1x8x4xf32> to vector<8x4xf32>
    %14 = vector.extract_strided_slice %3 {offsets = [0, 1], sizes = [4, 384], strides = [1, 1]} : vector<4x512xf32> to vector<4x384xf32>
    %cst_10 = arith.constant dense<0.000000e+00> : vector<8x384xf32>
    %15 = tpu.matmul %13, %14, %cst_10 {dimension_numbers = #tpu.dot_dimension_numbers<[1], [0], [0], [1], [0, 0, 1, 1], [], []>} : vector<8x4xf32>, vector<4x384xf32>, vector<8x384xf32> -> vector<8x384xf32>
    %16 = arith.addf %11, %15 : vector<8x384xf32>
    %c2 = arith.constant 2 : index
    %c0_11 = arith.constant 0 : index
    %c0_12 = arith.constant 0 : index
    %17 = vector.load %arg2[%c2, %c0_11, %c0_12] : memref<9x8x4xf32, #tpu.memory_space<vmem>>, vector<1x8x4xf32>
    %18 = vector.shape_cast %17 : vector<1x8x4xf32> to vector<8x4xf32>
    %19 = vector.extract_strided_slice %3 {offsets = [0, 2], sizes = [4, 384], strides = [1, 1]} : vector<4x512xf32> to vector<4x384xf32>
    %cst_13 = arith.constant dense<0.000000e+00> : vector<8x384xf32>
    %20 = tpu.matmul %18, %19, %cst_13 {dimension_numbers = #tpu.dot_dimension_numbers<[1], [0], [0], [1], [0, 0, 1, 1], [], []>} : vector<8x4xf32>, vector<4x384xf32>, vector<8x384xf32> -> vector<8x384xf32>
    %21 = arith.addf %16, %20 : vector<8x384xf32>
    %c3 = arith.constant 3 : index
    %c0_14 = arith.constant 0 : index
    %c0_15 = arith.constant 0 : index
    %22 = vector.load %arg2[%c3, %c0_14, %c0_15] : memref<9x8x4xf32, #tpu.memory_space<vmem>>, vector<1x8x4xf32>
    %23 = vector.shape_cast %22 : vector<1x8x4xf32> to vector<8x4xf32>
    %24 = vector.extract_strided_slice %3 {offsets = [0, 18], sizes = [4, 384], strides = [1, 1]} : vector<4x512xf32> to vector<4x384xf32>
    %cst_16 = arith.constant dense<0.000000e+00> : vector<8x384xf32>
    %25 = tpu.matmul %23, %24, %cst_16 {dimension_numbers = #tpu.dot_dimension_numbers<[1], [0], [0], [1], [0, 0, 1, 1], [], []>} : vector<8x4xf32>, vector<4x384xf32>, vector<8x384xf32> -> vector<8x384xf32>
    %26 = arith.addf %21, %25 : vector<8x384xf32>
    %c4 = arith.constant 4 : index
    %c0_17 = arith.constant 0 : index
    %c0_18 = arith.constant 0 : index
    %27 = vector.load %arg2[%c4, %c0_17, %c0_18] : memref<9x8x4xf32, #tpu.memory_space<vmem>>, vector<1x8x4xf32>
    %28 = vector.shape_cast %27 : vector<1x8x4xf32> to vector<8x4xf32>
    %29 = vector.extract_strided_slice %3 {offsets = [0, 19], sizes = [4, 384], strides = [1, 1]} : vector<4x512xf32> to vector<4x384xf32>
    %cst_19 = arith.constant dense<0.000000e+00> : vector<8x384xf32>
    %30 = tpu.matmul %28, %29, %cst_19 {dimension_numbers = #tpu.dot_dimension_numbers<[1], [0], [0], [1], [0, 0, 1, 1], [], []>} : vector<8x4xf32>, vector<4x384xf32>, vector<8x384xf32> -> vector<8x384xf32>
    %31 = arith.addf %26, %30 : vector<8x384xf32>
    %c5 = arith.constant 5 : index
    %c0_20 = arith.constant 0 : index
    %c0_21 = arith.constant 0 : index
    %32 = vector.load %arg2[%c5, %c0_20, %c0_21] : memref<9x8x4xf32, #tpu.memory_space<vmem>>, vector<1x8x4xf32>
    %33 = vector.shape_cast %32 : vector<1x8x4xf32> to vector<8x4xf32>
    %34 = vector.extract_strided_slice %3 {offsets = [0, 20], sizes = [4, 384], strides = [1, 1]} : vector<4x512xf32> to vector<4x384xf32>
    %cst_22 = arith.constant dense<0.000000e+00> : vector<8x384xf32>
    %35 = tpu.matmul %33, %34, %cst_22 {dimension_numbers = #tpu.dot_dimension_numbers<[1], [0], [0], [1], [0, 0, 1, 1], [], []>} : vector<8x4xf32>, vector<4x384xf32>, vector<8x384xf32> -> vector<8x384xf32>
    %36 = arith.addf %31, %35 : vector<8x384xf32>
    %c6 = arith.constant 6 : index
    %c0_23 = arith.constant 0 : index
    %c0_24 = arith.constant 0 : index
    %37 = vector.load %arg2[%c6, %c0_23, %c0_24] : memref<9x8x4xf32, #tpu.memory_space<vmem>>, vector<1x8x4xf32>
    %38 = vector.shape_cast %37 : vector<1x8x4xf32> to vector<8x4xf32>
    %39 = vector.extract_strided_slice %3 {offsets = [0, 36], sizes = [4, 384], strides = [1, 1]} : vector<4x512xf32> to vector<4x384xf32>
    %cst_25 = arith.constant dense<0.000000e+00> : vector<8x384xf32>
    %40 = tpu.matmul %38, %39, %cst_25 {dimension_numbers = #tpu.dot_dimension_numbers<[1], [0], [0], [1], [0, 0, 1, 1], [], []>} : vector<8x4xf32>, vector<4x384xf32>, vector<8x384xf32> -> vector<8x384xf32>
    %41 = arith.addf %36, %40 : vector<8x384xf32>
    %c7 = arith.constant 7 : index
    %c0_26 = arith.constant 0 : index
    %c0_27 = arith.constant 0 : index
    %42 = vector.load %arg2[%c7, %c0_26, %c0_27] : memref<9x8x4xf32, #tpu.memory_space<vmem>>, vector<1x8x4xf32>
    %43 = vector.shape_cast %42 : vector<1x8x4xf32> to vector<8x4xf32>
    %44 = vector.extract_strided_slice %3 {offsets = [0, 37], sizes = [4, 384], strides = [1, 1]} : vector<4x512xf32> to vector<4x384xf32>
    %cst_28 = arith.constant dense<0.000000e+00> : vector<8x384xf32>
    %45 = tpu.matmul %43, %44, %cst_28 {dimension_numbers = #tpu.dot_dimension_numbers<[1], [0], [0], [1], [0, 0, 1, 1], [], []>} : vector<8x4xf32>, vector<4x384xf32>, vector<8x384xf32> -> vector<8x384xf32>
    %46 = arith.addf %41, %45 : vector<8x384xf32>
    %c8 = arith.constant 8 : index
    %c0_29 = arith.constant 0 : index
    %c0_30 = arith.constant 0 : index
    %47 = vector.load %arg2[%c8, %c0_29, %c0_30] : memref<9x8x4xf32, #tpu.memory_space<vmem>>, vector<1x8x4xf32>
    %48 = vector.shape_cast %47 : vector<1x8x4xf32> to vector<8x4xf32>
    %49 = vector.extract_strided_slice %3 {offsets = [0, 38], sizes = [4, 384], strides = [1, 1]} : vector<4x512xf32> to vector<4x384xf32>
    %cst_31 = arith.constant dense<0.000000e+00> : vector<8x384xf32>
    %50 = tpu.matmul %48, %49, %cst_31 {dimension_numbers = #tpu.dot_dimension_numbers<[1], [0], [0], [1], [0, 0, 1, 1], [], []>} : vector<8x4xf32>, vector<4x384xf32>, vector<8x384xf32> -> vector<8x384xf32>
    %51 = arith.addf %46, %50 : vector<8x384xf32>
    %c0_32 = arith.constant 0 : index
    %c0_33 = arith.constant 0 : index
    %c0_34 = arith.constant 0 : index
    %52 = vector.load %arg4[%c0_32, %c0_33, %c0_34] : memref<1x8x384xf32, #tpu.memory_space<vmem>>, vector<1x8x384xf32>
    %53 = vector.shape_cast %52 : vector<1x8x384xf32> to vector<8x384xf32>
    %54 = vector.shape_cast %51 : vector<8x384xf32> to vector<1x8x384xf32>
    tpu.vector_store %arg4[%c0_32, %c0_33, %c0_34], %54 {strides = array<i32>} : memref<1x8x384xf32, #tpu.memory_space<vmem>>, vector<1x8x384xf32>,
    return
  }
  func.func @transform_0(%arg0: i32) -> (i32, i32, i32) {
    %c0_i32 = arith.constant 0 : i32
    %c0_i32_0 = arith.constant 0 : i32
    %c0_i32_1 = arith.constant 0 : i32
    return %arg0, %c0_i32, %c0_i32_0 : i32, i32, i32
  }
  func.func @transform_1(%arg0: i32) -> (i32, i32, i32) {
    %c0_i32 = arith.constant 0 : i32
    %c0_i32_0 = arith.constant 0 : i32
    %c0_i32_1 = arith.constant 0 : i32
    %c0_i32_2 = arith.constant 0 : i32
    return %c0_i32, %c0_i32_0, %c0_i32_1 : i32, i32, i32
  }
  func.func @transform_2(%arg0: i32) -> (i32, i32) {
    %c0_i32 = arith.constant 0 : i32
    %c0_i32_0 = arith.constant 0 : i32
    %c0_i32_1 = arith.constant 0 : i32
    return %c0_i32, %c0_i32_0 : i32, i32
  }
  func.func @transform_3(%arg0: i32) -> (i32, i32, i32) {
    %c0_i32 = arith.constant 0 : i32
    %c0_i32_0 = arith.constant 0 : i32
    %c0_i32_1 = arith.constant 0 : i32
    return %arg0, %c0_i32, %c0_i32_0 : i32, i32, i32
  }
}

</mosaic_0001>

<llo_original>
// kernel: a_call__.1
$region0: #{a_call__.1}
  #allocation0 [shape = 'u32[]', space=smem, size = 0x4, offset = 0x4, fixed_abs, tag = 'smem constant byte address 0x4 - core index']
  #allocation1 [shape = 'u32[144,128]{1,0:T(1,128)}', space=vmem, size = 0x12000, scoped, tag = 'internal scratch']
  %s0 = inlined_call_operand.vmem [shape: f32[2,4,512], index: 0, kind: input, shape index: {}]
  %s1 = inlined_call_operand.vmem [shape: f32[9,8,4], index: 1, kind: input, shape index: {}]
  %s2 = inlined_call_operand.vmem [shape: f32[8,1], index: 2, kind: input, shape index: {}]
  %s3 = inlined_call_operand.vmem [shape: f32[2,8,384], index: 3, kind: output, shape index: {}]
  %s4 = sld [smem:[#allocation0]]
  $region45: #{a_call__.1} parent=0
    _
  %s6 = ssub.s32 1, %s4
  %s7 = scalar_select 0, %s6, %s4
  loop: start=0, step=1, limit=4
  $region2: #{a_call__.1} parent=0 // loop_pre_header
    _
  $region3: #{a_call__.1} parent=0 // loop_header
    %s9 = sphi 0, %s13
    %p10 = scmp.ge.s32.totalorder %s9, 4
    %s19 = sphi 0, %s21
    %s22 = sphi 0, %s19
    %s23 = sphi 0, %s22
    %s39 = sphi 0, %s23
    %s43 = sphi 0, %s43
    %s45 = sphi 0, %s43
    %s46 = sphi 0, %s45
    %s60 = sphi 0, %s46
    %s64 = sphi 0, %s64
    %s66 = sphi 0, %s64
    %s67 = sphi 0, %s66
    %s81 = sphi 0, %s67
    %s87 = sphi 0, %s89
    %s90 = sphi 0, %s87
    %s91 = sphi 0, %s90
    %s107 = sphi 0, %s91
  $region4: #{a_call__.1} parent=0 // loop_header_branch
    %12 = sbr.rel (%p10) target = $region8
  $region5: #{a_call__.1} parent=0 // loop_body
    %s14 = ssub.s32 %s9, 1
    %s15 = ssub.s32 %s9, 2
    %s16 = sadd.s32 %s9, 1
    %s17 = ssub.s32 %s9, %s16
    %p18 = scmp.eq.s32.totalorder %s17, 0
    %s20 = sadd.s32 %s19, 1
    %s21 = scalar_select %p18, %s19, %s20
    %p24 = pneg %p18
    %p25 = scmp.eq.s32.totalorder %s9, 1
    %p26 = por %p24, %p25
    %p27 = scmp.ne.s32.totalorder %s19, %s22
    %p28 = scmp.eq.s32.totalorder %s9, 0
    %p29 = por %p27, %p28
    %p30 = scmp.ne.s32.totalorder %s19, %s22
    %p31 = scmp.eq.s32.totalorder %s14, 1
    %p32 = por %p30, %p31
    %p33 = scmp.ne.s32.totalorder %s22, %s23
    %p34 = scmp.eq.s32.totalorder %s14, 0
    %p35 = por %p33, %p34
    %p36 = scmp.ne.s32.totalorder %s22, %s23
    %p37 = scmp.eq.s32.totalorder %s15, 1
    %p38 = por %p36, %p37
    %p40 = scmp.ne.s32.totalorder %s23, %s39
    %p41 = scmp.eq.s32.totalorder %s15, 0
    %p42 = por %p40, %p41
    %s44 = sadd.s32 %s43, 1
    %p47 = scmp.eq.s32.totalorder %s9, 1
    %p48 = scmp.ne.s32.totalorder %s43, %s45
    %p49 = scmp.eq.s32.totalorder %s9, 0
    %p50 = por %p48, %p49
    %p51 = scmp.ne.s32.totalorder %s43, %s45
    %p52 = scmp.eq.s32.totalorder %s14, 1
    %p53 = por %p51, %p52
    %p54 = scmp.ne.s32.totalorder %s45, %s46
    %p55 = scmp.eq.s32.totalorder %s14, 0
    %p56 = por %p54, %p55
    %p57 = scmp.ne.s32.totalorder %s45, %s46
    %p58 = scmp.eq.s32.totalorder %s15, 1
    %p59 = por %p57, %p58
    %p61 = scmp.ne.s32.totalorder %s46, %s60
    %p62 = scmp.eq.s32.totalorder %s15, 0
    %p63 = por %p61, %p62
    %s65 = sadd.s32 %s64, 1
    %p68 = scmp.eq.s32.totalorder %s9, 1
    %p69 = scmp.ne.s32.totalorder %s64, %s66
    %p70 = scmp.eq.s32.totalorder %s9, 0
    %p71 = por %p69, %p70
    %p72 = scmp.ne.s32.totalorder %s64, %s66
    %p73 = scmp.eq.s32.totalorder %s14, 1
    %p74 = por %p72, %p73
    %p75 = scmp.ne.s32.totalorder %s66, %s67
    %p76 = scmp.eq.s32.totalorder %s14, 0
    %p77 = por %p75, %p76
    %p78 = scmp.ne.s32.totalorder %s66, %s67
    %p79 = scmp.eq.s32.totalorder %s15, 1
    %p80 = por %p78, %p79
    %p82 = scmp.ne.s32.totalorder %s67, %s81
    %p83 = scmp.eq.s32.totalorder %s15, 0
    %p84 = por %p82, %p83
    %s85 = ssub.s32 %s9, %s16
    %p86 = scmp.eq.s32.totalorder %s85, 0
    %s88 = sadd.s32 %s87, 1
    %s89 = scalar_select %p86, %s87, %s88
    %p92 = pneg %p86
    %p93 = scmp.eq.s32.totalorder %s9, 1
    %p94 = por %p92, %p93
    %p95 = scmp.ne.s32.totalorder %s87, %s90
    %p96 = scmp.eq.s32.totalorder %s9, 0
    %p97 = por %p95, %p96
    %p98 = scmp.ne.s32.totalorder %s87, %s90
    %p99 = scmp.eq.s32.totalorder %s14, 1
    %p100 = por %p98, %p99
    %p101 = scmp.ne.s32.totalorder %s90, %s91
    %p102 = scmp.eq.s32.totalorder %s14, 0
    %p103 = por %p101, %p102
    %p104 = scmp.ne.s32.totalorder %s90, %s91
    %p105 = scmp.eq.s32.totalorder %s15, 1
    %p106 = por %p104, %p105
    %p108 = scmp.ne.s32.totalorder %s91, %s107
    %p109 = scmp.eq.s32.totalorder %s15, 0
    %p110 = por %p108, %p109
    %p111 = scmp.le.s32.totalorder 1, %s9
    %p112 = scmp.lt.s32.totalorder %s9, 3
    %p113 = pnand %p111, %p112
    %p114 = pneg %p113
    // Predicated region
    $region9: #{a_call__.1} parent=5 // pred_check
      _
    $region10: #{a_call__.1} parent=5 // pred_check_branch
      %116 = sbr.rel (%p113) target = $region12
    $region11: #{a_call__.1} parent=5 // pred_region
      %s117 = ssub.s32 %s9, 1
      // Predicated region
      $region13: #{a_call__.1} parent=11 // pred_check
        %p118 = pneg %p56
      $region14: #{a_call__.1} parent=11 // pred_check_branch
        %120 = sbr.rel (%p118) target = $region16
      $region15: #{a_call__.1} parent=11 // pred_region
        _
      $region16: #{a_call__.1} parent=11 // pred_fallthru
        _
      // Predicated region
      $region17: #{a_call__.1} parent=11 // pred_check
        %p121 = pneg %p77
      $region18: #{a_call__.1} parent=11 // pred_check_branch
        %123 = sbr.rel (%p121) target = $region20
      $region19: #{a_call__.1} parent=11 // pred_region
        _
      $region20: #{a_call__.1} parent=11 // pred_fallthru
        _
    $region12: #{a_call__.1} parent=5 // pred_fallthru
      _
    %p124 = scmp.lt.s32.totalorder %s9, 2
    // Predicated region
    $region21: #{a_call__.1} parent=5 // pred_check
      %p125 = pneg %p124
    $region22: #{a_call__.1} parent=5 // pred_check_branch
      %127 = sbr.rel (%p125) target = $region24
    $region23: #{a_call__.1} parent=5 // pred_region
      // Predicated region
      $region25: #{a_call__.1} parent=23 // pred_check
        %p128 = pneg %p29
      $region26: #{a_call__.1} parent=23 // pred_check_branch
        %130 = sbr.rel (%p128) target = $region28
      $region27: #{a_call__.1} parent=23 // pred_region
        %p131 = scmp.lt.s32.totalorder %s9, 1
        %s132 = scalar_select %p131, %s9, 1
        %s133 = smul.addr %s132, 4
        %s134 = smul.addr %s133, 4
        %s135 = scalar_lea.vmem %s0, %s134
      $region28: #{a_call__.1} parent=23 // pred_fallthru
        _
    $region24: #{a_call__.1} parent=5 // pred_fallthru
      _
    %p136 = scmp.le.s32.totalorder 1, %s9
    %p137 = scmp.lt.s32.totalorder %s9, 3
    %p138 = pnand %p136, %p137
    %p139 = pneg %p138
    // Predicated region
    $region29: #{a_call__.1} parent=5 // pred_check
      _
    $region30: #{a_call__.1} parent=5 // pred_check_branch
      %141 = sbr.rel (%p138) target = $region32
    $region31: #{a_call__.1} parent=5 // pred_region
      %s142 = ssub.s32 %s9, 1
      %p143 = scmp.lt.s32.totalorder %s14, 1
      %s144 = scalar_select %p143, %s14, 1
      %s145 = smul.addr %s144, 4
      %s146 = smul.addr %s145, 4
      %s147 = scalar_lea.vmem %s0, %s146
      %p148 = pneg %p35
      %p149 = pneg %p32
      %p150 = pneg %p56
      %p151 = pneg %p53
      %p152 = pneg %p77
      %p153 = pneg %p74
      %p154 = pneg %p103
      %p155 = pneg %p100
      %p156 = scmp.lt.s32.totalorder %s14, 1
      %s157 = scalar_select %p156, %s14, 1
      %s158 = smul.addr %s157, 3
      %s159 = smul.addr %s158, 8
      %s160 = scalar_lea.vmem %s3, %s159
      %p161 = scmp.lt.s32.totalorder %s14, 1
      %s162 = scalar_select %p161, %s14, 1
      %s163 = smul.addr %s162, 4
      %s164 = smul.addr %s163, 4
      %s165 = scalar_lea.vmem %s0, %s164
      %p166 = scmp.lt.s32.totalorder %s14, 1
      %s167 = scalar_select %p166, %s14, 1
      %s168 = smul.addr %s167, 3
      %s169 = smul.addr %s168, 8
      %s170 = scalar_lea.vmem %s3, %s169
      %v171 = vld [vmem:[%s165] sm:$0xff]
      %v172 = vld [vmem:[%s165 + $0x8] sm:$0xff]
      %v173 = vmax.f32 %v171, 0.0
      %v174 = vmax.f32 %v172, 0.0
      %v175 = vld [vmem:[%s2] sm:$0xff]
      %177 = vset.pattern.permute.xlu0 0
      %178 = vperm.xlu0 %177, %v175
      %v179 = vpop.permute.xlu0 %178
      %v181 = vld [vmem:[%s1] sm:$0xff]
      %v184 = vcombine.high %v173, %v173
      %vm185 = vcmask 31744
      %v187 = vsel %vm185, %v181, 0
      %vm189 = vcmask 1043456
      %v190 = vsel %vm189, %v173, 0
      %v192 = vsel %vm189, %v184, 0
      %v194 = vsel %vm189, %v174, 0
      %196 = vmatprep.subr.mxu0 %v192
      %197 = vmatpush1.msra.mxu0 %v190
      %198 = vmatprep.subr.mxu0 0.0
      %199 = vmatpush1.msra.mxu0 0.0
      %200 = vmatprep.subr.mxu0 0.0
      %201 = vmatpush1.msra.mxu0 0.0
      %202 = vmatprep.subr.mxu0 0.0
      %203 = vmatpush1.msra.mxu0 0.0
      %204 = vmatprep.subr.mxu0 0.0
      %205 = vmatpush1.msra.mxu0 0.0
      %206 = vmatprep.subr.mxu0 0.0
      %207 = vmatpush1.msra.mxu0 0.0
      %208 = vmatprep.subr.mxu0 0.0
      %209 = vmatpush1.msra.mxu0 0.0
      %210 = vmatprep.subr.mxu0 0.0
      %211 = vmatpush1.msra.mxu0 0.0
      %212 = vmatprep.subr.mxu0 0.0
      %213 = vmatpush1.msra.mxu0 0.0
      %214 = vmatprep.subr.mxu0 0.0
      %215 = vmatpush1.msra.mxu0 0.0
      %216 = vmatprep.subr.mxu0 0.0
      %217 = vmatpush1.msra.mxu0 0.0
      %218 = vmatprep.subr.mxu0 0.0
      %219 = vmatpush1.msra.mxu0 0.0
      %220 = vmatprep.subr.mxu0 0.0
      %221 = vmatpush1.msra.mxu0 0.0
      %222 = vmatprep.subr.mxu0 0.0
      %223 = vmatpush1.msra.mxu0 0.0
      %224 = vmatprep.subr.mxu0 0.0
      %225 = vmatpush1.msra.mxu0 0.0
      %226 = vmatprep.subr.mxu0 0.0
      %227 = vmatpush1.msra.mxu0 0.0
      %228 = vmatprep.subr.mxu0 0.0
      %229 = vmatpush1.msra.mxu0 0.0
      %230 = vmatprep.subr.mxu0 0.0
      %231 = vmatpush1.msra.mxu0 0.0
      %232 = vmatprep.subr.mxu0 0.0
      %233 = vmatpush1.msra.mxu0 0.0
      %234 = vmatprep.subr.mxu0 0.0
      %235 = vmatpush1.msra.mxu0 0.0
      %236 = vmatprep.subr.mxu0 0.0
      %237 = vmatpush1.msra.mxu0 0.0
      %238 = vmatprep.subr.mxu0 0.0
      %239 = vmatpush1.msra.mxu0 0.0
      %240 = vmatprep.subr.mxu0 0.0
      %241 = vmatpush1.msra.mxu0 0.0
      %242 = vmatprep.subr.mxu0 0.0
      %243 = vmatpush1.msra.mxu0 0.0
      %244 = vmatprep.subr.mxu0 0.0
      %245 = vmatpush1.msra.mxu0 0.0
      %246 = vmatprep.subr.mxu0 0.0
      %247 = vmatpush1.msra.mxu0 0.0
      %248 = vmatprep.subr.mxu0 0.0
      %249 = vmatpush1.msra.mxu0 0.0
      %250 = vmatprep.subr.mxu0 0.0
      %251 = vmatpush1.msra.mxu0 0.0
      %252 = vmatprep.subr.mxu0 0.0
      %253 = vmatpush1.msra.mxu0 0.0
      %254 = vmatprep.subr.mxu0 0.0
      %255 = vmatpush1.msra.mxu0 0.0
      %256 = vmatprep.subr.mxu0 0.0
      %257 = vmatpush1.msra.mxu0 0.0
      %258 = vmatprep.subr.mxu0 0.0
      %259 = vmatpush1.msra.mxu0 0.0
      %260 = vmatprep.mubr.f32.mxu0 0.0
      %261 = vmatmul.mubr.f32.gmra.mrb[0].mxu0 %v187
      %v262 = vpop.f32.mrb[0].mxu0
      %v263 = vadd.f32 0.0, %v262
      %v264 = vpop.f32.mrb[0].mxu0
      %v265 = vadd.f32 0.0, %v264
      %266 = vdwg.mxu0
      %267 = vmatprep.subr.mxu0 0.0
      %268 = vmatpush1.msra.mxu0 %v194
      %269 = vmatprep.subr.mxu0 0.0
      %270 = vmatpush1.msra.mxu0 0.0
      %271 = vmatprep.subr.mxu0 0.0
      %272 = vmatpush1.msra.mxu0 0.0
      %273 = vmatprep.subr.mxu0 0.0
      %274 = vmatpush1.msra.mxu0 0.0
      %275 = vmatprep.subr.mxu0 0.0
      %276 = vmatpush1.msra.mxu0 0.0
      %277 = vmatprep.subr.mxu0 0.0
      %278 = vmatpush1.msra.mxu0 0.0
      %279 = vmatprep.subr.mxu0 0.0
      %280 = vmatpush1.msra.mxu0 0.0
      %281 = vmatprep.subr.mxu0 0.0
      %282 = vmatpush1.msra.mxu0 0.0
      %283 = vmatprep.subr.mxu0 0.0
      %284 = vmatpush1.msra.mxu0 0.0
      %285 = vmatprep.subr.mxu0 0.0
      %286 = vmatpush1.msra.mxu0 0.0
      %287 = vmatprep.subr.mxu0 0.0
      %288 = vmatpush1.msra.mxu0 0.0
      %289 = vmatprep.subr.mxu0 0.0
      %290 = vmatpush1.msra.mxu0 0.0
      %291 = vmatprep.subr.mxu0 0.0
      %292 = vmatpush1.msra.mxu0 0.0
      %293 = vmatprep.subr.mxu0 0.0
      %294 = vmatpush1.msra.mxu0 0.0
      %295 = vmatprep.subr.mxu0 0.0
      %296 = vmatpush1.msra.mxu0 0.0
      %297 = vmatprep.subr.mxu0 0.0
      %298 = vmatpush1.msra.mxu0 0.0
      %299 = vmatprep.subr.mxu0 0.0
      %300 = vmatpush1.msra.mxu0 0.0
      %301 = vmatprep.subr.mxu0 0.0
      %302 = vmatpush1.msra.mxu0 0.0
      %303 = vmatprep.subr.mxu0 0.0
      %304 = vmatpush1.msra.mxu0 0.0
      %305 = vmatprep.subr.mxu0 0.0
      %306 = vmatpush1.msra.mxu0 0.0
      %307 = vmatprep.subr.mxu0 0.0
      %308 = vmatpush1.msra.mxu0 0.0
      %309 = vmatprep.subr.mxu0 0.0
      %310 = vmatpush1.msra.mxu0 0.0
      %311 = vmatprep.subr.mxu0 0.0
      %312 = vmatpush1.msra.mxu0 0.0
      %313 = vmatprep.subr.mxu0 0.0
      %314 = vmatpush1.msra.mxu0 0.0
      %315 = vmatprep.subr.mxu0 0.0
      %316 = vmatpush1.msra.mxu0 0.0
      %317 = vmatprep.subr.mxu0 0.0
      %318 = vmatpush1.msra.mxu0 0.0
      %319 = vmatprep.subr.mxu0 0.0
      %320 = vmatpush1.msra.mxu0 0.0
      %321 = vmatprep.subr.mxu0 0.0
      %322 = vmatpush1.msra.mxu0 0.0
      %323 = vmatprep.subr.mxu0 0.0
      %324 = vmatpush1.msra.mxu0 0.0
      %325 = vmatprep.subr.mxu0 0.0
      %326 = vmatpush1.msra.mxu0 0.0
      %327 = vmatprep.subr.mxu0 0.0
      %328 = vmatpush1.msra.mxu0 0.0
      %329 = vmatprep.subr.mxu0 0.0
      %330 = vmatpush1.msra.mxu0 0.0
      %331 = vmatprep.mubr.f32.mxu0 0.0
      %332 = vmatmul.mubr.f32.gmra.mrb[0].mxu0 %v187
      %v333 = vpop.f32.mrb[0].mxu0
      %v334 = vadd.f32 0.0, %v333
      %v335 = vpop.f32.mrb[0].mxu0
      %336 = vdwg.mxu0
      %v337 = vadd.f32 %v179, %v263
      %v338 = vadd.f32 %v179, %v265
      %v339 = vadd.f32 %v179, %v334
      %s340 = scalar_lea.vmem %s1, 8
      %v341 = vld [vmem:[%s340] sm:$0xff]
      %v342 = vcombine.high %v174, %v174
      %343 = vrot.lane.b32.xlu0 %v173, 127
      %v344 = vpop.permute.xlu0 %343
      %345 = vrot.lane.b32.xlu0 %v184, 127
      %v346 = vpop.permute.xlu0 %345
      %347 = vrot.lane.b32.xlu0 %v174, 127
      %v348 = vpop.permute.xlu0 %347
      %349 = vrot.lane.b32.xlu0 %v342, 127
      %v350 = vpop.permute.xlu0 %349
      %vm351 = vcmask 1039360
      %v352 = vsel %vm351, %v344, %v346
      %v353 = vsel %vm351, %v346, %v348
      %v354 = vsel %vm351, %v348, %v350
      %v356 = vsel %vm185, %v341, 0
      %v358 = vsel %vm189, %v352, 0
      %v360 = vsel %vm189, %v353, 0
      %v362 = vsel %vm189, %v354, 0
      %364 = vmatprep.subr.mxu0 %v360
      %365 = vmatpush1.msra.mxu0 %v358
      %366 = vmatprep.subr.mxu0 0.0
      %367 = vmatpush1.msra.mxu0 0.0
      %368 = vmatprep.subr.mxu0 0.0
      %369 = vmatpush1.msra.mxu0 0.0
      %370 = vmatprep.subr.mxu0 0.0
      %371 = vmatpush1.msra.mxu0 0.0
      %372 = vmatprep.subr.mxu0 0.0
      %373 = vmatpush1.msra.mxu0 0.0
      %374 = vmatprep.subr.mxu0 0.0
      %375 = vmatpush1.msra.mxu0 0.0
      %376 = vmatprep.subr.mxu0 0.0
      %377 = vmatpush1.msra.mxu0 0.0
      %378 = vmatprep.subr.mxu0 0.0
      %379 = vmatpush1.msra.mxu0 0.0
      %380 = vmatprep.subr.mxu0 0.0
      %381 = vmatpush1.msra.mxu0 0.0
      %382 = vmatprep.subr.mxu0 0.0
      %383 = vmatpush1.msra.mxu0 0.0
      %384 = vmatprep.subr.mxu0 0.0
      %385 = vmatpush1.msra.mxu0 0.0
      %386 = vmatprep.subr.mxu0 0.0
      %387 = vmatpush1.msra.mxu0 0.0
      %388 = vmatprep.subr.mxu0 0.0
      %389 = vmatpush1.msra.mxu0 0.0
      %390 = vmatprep.subr.mxu0 0.0
      %391 = vmatpush1.msra.mxu0 0.0
      %392 = vmatprep.subr.mxu0 0.0
      %393 = vmatpush1.msra.mxu0 0.0
      %394 = vmatprep.subr.mxu0 0.0
      %395 = vmatpush1.msra.mxu0 0.0
      %396 = vmatprep.subr.mxu0 0.0
      %397 = vmatpush1.msra.mxu0 0.0
      %398 = vmatprep.subr.mxu0 0.0
      %399 = vmatpush1.msra.mxu0 0.0
      %400 = vmatprep.subr.mxu0 0.0
      %401 = vmatpush1.msra.mxu0 0.0
      %402 = vmatprep.subr.mxu0 0.0
      %403 = vmatpush1.msra.mxu0 0.0
      %404 = vmatprep.subr.mxu0 0.0
      %405 = vmatpush1.msra.mxu0 0.0
      %406 = vmatprep.subr.mxu0 0.0
      %407 = vmatpush1.msra.mxu0 0.0
      %408 = vmatprep.subr.mxu0 0.0
      %409 = vmatpush1.msra.mxu0 0.0
      %410 = vmatprep.subr.mxu0 0.0
      %411 = vmatpush1.msra.mxu0 0.0
      %412 = vmatprep.subr.mxu0 0.0
      %413 = vmatpush1.msra.mxu0 0.0
      %414 = vmatprep.subr.mxu0 0.0
      %415 = vmatpush1.msra.mxu0 0.0
      %416 = vmatprep.subr.mxu0 0.0
      %417 = vmatpush1.msra.mxu0 0.0
      %418 = vmatprep.subr.mxu0 0.0
      %419 = vmatpush1.msra.mxu0 0.0
      %420 = vmatprep.subr.mxu0 0.0
      %421 = vmatpush1.msra.mxu0 0.0
      %422 = vmatprep.subr.mxu0 0.0
      %423 = vmatpush1.msra.mxu0 0.0
      %424 = vmatprep.subr.mxu0 0.0
      %425 = vmatpush1.msra.mxu0 0.0
      %426 = vmatprep.subr.mxu0 0.0
      %427 = vmatpush1.msra.mxu0 0.0
      %428 = vmatprep.mubr.f32.mxu0 0.0
      %429 = vmatmul.mubr.f32.gmra.mrb[0].mxu0 %v356
      %v430 = vpop.f32.mrb[0].mxu0
      %v431 = vadd.f32 0.0, %v430
      %v432 = vpop.f32.mrb[0].mxu0
      %v433 = vadd.f32 0.0, %v432
      %434 = vdwg.mxu0
      %435 = vmatprep.subr.mxu0 0.0
      %436 = vmatpush1.msra.mxu0 %v362
      %437 = vmatprep.subr.mxu0 0.0
      %438 = vmatpush1.msra.mxu0 0.0
      %439 = vmatprep.subr.mxu0 0.0
      %440 = vmatpush1.msra.mxu0 0.0
      %441 = vmatprep.subr.mxu0 0.0
      %442 = vmatpush1.msra.mxu0 0.0
      %443 = vmatprep.subr.mxu0 0.0
      %444 = vmatpush1.msra.mxu0 0.0
      %445 = vmatprep.subr.mxu0 0.0
      %446 = vmatpush1.msra.mxu0 0.0
      %447 = vmatprep.subr.mxu0 0.0
      %448 = vmatpush1.msra.mxu0 0.0
      %449 = vmatprep.subr.mxu0 0.0
      %450 = vmatpush1.msra.mxu0 0.0
      %451 = vmatprep.subr.mxu0 0.0
      %452 = vmatpush1.msra.mxu0 0.0
      %453 = vmatprep.subr.mxu0 0.0
      %454 = vmatpush1.msra.mxu0 0.0
      %455 = vmatprep.subr.mxu0 0.0
      %456 = vmatpush1.msra.mxu0 0.0
      %457 = vmatprep.subr.mxu0 0.0
      %458 = vmatpush1.msra.mxu0 0.0
      %459 = vmatprep.subr.mxu0 0.0
      %460 = vmatpush1.msra.mxu0 0.0
      %461 = vmatprep.subr.mxu0 0.0
      %462 = vmatpush1.msra.mxu0 0.0
      %463 = vmatprep.subr.mxu0 0.0
      %464 = vmatpush1.msra.mxu0 0.0
      %465 = vmatprep.subr.mxu0 0.0
      %466 = vmatpush1.msra.mxu0 0.0
      %467 = vmatprep.subr.mxu0 0.0
      %468 = vmatpush1.msra.mxu0 0.0
      %469 = vmatprep.subr.mxu0 0.0
      %470 = vmatpush1.msra.mxu0 0.0
      %471 = vmatprep.subr.mxu0 0.0
      %472 = vmatpush1.msra.mxu0 0.0
      %473 = vmatprep.subr.mxu0 0.0
      %474 = vmatpush1.msra.mxu0 0.0
      %475 = vmatprep.subr.mxu0 0.0
      %476 = vmatpush1.msra.mxu0 0.0
      %477 = vmatprep.subr.mxu0 0.0
      %478 = vmatpush1.msra.mxu0 0.0
      %479 = vmatprep.subr.mxu0 0.0
      %480 = vmatpush1.msra.mxu0 0.0
      %481 = vmatprep.subr.mxu0 0.0
      %482 = vmatpush1.msra.mxu0 0.0
      %483 = vmatprep.subr.mxu0 0.0
      %484 = vmatpush1.msra.mxu0 0.0
      %485 = vmatprep.subr.mxu0 0.0
      %486 = vmatpush1.msra.mxu0 0.0
      %487 = vmatprep.subr.mxu0 0.0
      %488 = vmatpush1.msra.mxu0 0.0
      %489 = vmatprep.subr.mxu0 0.0
      %490 = vmatpush1.msra.mxu0 0.0
      %491 = vmatprep.subr.mxu0 0.0
      %492 = vmatpush1.msra.mxu0 0.0
      %493 = vmatprep.subr.mxu0 0.0
      %494 = vmatpush1.msra.mxu0 0.0
      %495 = vmatprep.subr.mxu0 0.0
      %496 = vmatpush1.msra.mxu0 0.0
      %497 = vmatprep.subr.mxu0 0.0
      %498 = vmatpush1.msra.mxu0 0.0
      %499 = vmatprep.mubr.f32.mxu0 0.0
      %500 = vmatmul.mubr.f32.gmra.mrb[0].mxu0 %v356
      %v501 = vpop.f32.mrb[0].mxu0
      %v502 = vadd.f32 0.0, %v501
      %v503 = vpop.f32.mrb[0].mxu0
      %504 = vdwg.mxu0
      %v505 = vadd.f32 %v337, %v431
      %v506 = vadd.f32 %v338, %v433
      %v507 = vadd.f32 %v339, %v502
      %s508 = scalar_lea.vmem %s1, 16
      %v509 = vld [vmem:[%s508] sm:$0xff]
      %510 = vrot.lane.b32.xlu0 %v173, 126
      %v511 = vpop.permute.xlu0 %510
      %512 = vrot.lane.b32.xlu0 %v184, 126
      %v513 = vpop.permute.xlu0 %512
      %514 = vrot.lane.b32.xlu0 %v174, 126
      %v515 = vpop.permute.xlu0 %514
      %516 = vrot.lane.b32.xlu0 %v342, 126
      %v517 = vpop.permute.xlu0 %516
      %vm518 = vcmask 1031168
      %v519 = vsel %vm518, %v511, %v513
      %v520 = vsel %vm518, %v513, %v515
      %v521 = vsel %vm518, %v515, %v517
      %v523 = vsel %vm185, %v509, 0
      %v525 = vsel %vm189, %v519, 0
      %v527 = vsel %vm189, %v520, 0
      %v529 = vsel %vm189, %v521, 0
      %531 = vmatprep.subr.mxu0 %v527
      %532 = vmatpush1.msra.mxu0 %v525
      %533 = vmatprep.subr.mxu0 0.0
      %534 = vmatpush1.msra.mxu0 0.0
      %535 = vmatprep.subr.mxu0 0.0
      %536 = vmatpush1.msra.mxu0 0.0
      %537 = vmatprep.subr.mxu0 0.0
      %538 = vmatpush1.msra.mxu0 0.0
      %539 = vmatprep.subr.mxu0 0.0
      %540 = vmatpush1.msra.mxu0 0.0
      %541 = vmatprep.subr.mxu0 0.0
      %542 = vmatpush1.msra.mxu0 0.0
      %543 = vmatprep.subr.mxu0 0.0
      %544 = vmatpush1.msra.mxu0 0.0
      %545 = vmatprep.subr.mxu0 0.0
      %546 = vmatpush1.msra.mxu0 0.0
      %547 = vmatprep.subr.mxu0 0.0
      %548 = vmatpush1.msra.mxu0 0.0
      %549 = vmatprep.subr.mxu0 0.0
      %550 = vmatpush1.msra.mxu0 0.0
      %551 = vmatprep.subr.mxu0 0.0
      %552 = vmatpush1.msra.mxu0 0.0
      %553 = vmatprep.subr.mxu0 0.0
      %554 = vmatpush1.msra.mxu0 0.0
      %555 = vmatprep.subr.mxu0 0.0
      %556 = vmatpush1.msra.mxu0 0.0
      %557 = vmatprep.subr.mxu0 0.0
      %558 = vmatpush1.msra.mxu0 0.0
      %559 = vmatprep.subr.mxu0 0.0
      %560 = vmatpush1.msra.mxu0 0.0
      %561 = vmatprep.subr.mxu0 0.0
      %562 = vmatpush1.msra.mxu0 0.0
      %563 = vmatprep.subr.mxu0 0.0
      %564 = vmatpush1.msra.mxu0 0.0
      %565 = vmatprep.subr.mxu0 0.0
      %566 = vmatpush1.msra.mxu0 0.0
      %567 = vmatprep.subr.mxu0 0.0
      %568 = vmatpush1.msra.mxu0 0.0
      %569 = vmatprep.subr.mxu0 0.0
      %570 = vmatpush1.msra.mxu0 0.0
      %571 = vmatprep.subr.mxu0 0.0
      %572 = vmatpush1.msra.mxu0 0.0
      %573 = vmatprep.subr.mxu0 0.0
      %574 = vmatpush1.msra.mxu0 0.0
      %575 = vmatprep.subr.mxu0 0.0
      %576 = vmatpush1.msra.mxu0 0.0
      %577 = vmatprep.subr.mxu0 0.0
      %578 = vmatpush1.msra.mxu0 0.0
      %579 = vmatprep.subr.mxu0 0.0
      %580 = vmatpush1.msra.mxu0 0.0
      %581 = vmatprep.subr.mxu0 0.0
      %582 = vmatpush1.msra.mxu0 0.0
      %583 = vmatprep.subr.mxu0 0.0
      %584 = vmatpush1.msra.mxu0 0.0
      %585 = vmatprep.subr.mxu0 0.0
      %586 = vmatpush1.msra.mxu0 0.0
      %587 = vmatprep.subr.mxu0 0.0
      %588 = vmatpush1.msra.mxu0 0.0
      %589 = vmatprep.subr.mxu0 0.0
      %590 = vmatpush1.msra.mxu0 0.0
      %591 = vmatprep.subr.mxu0 0.0
      %592 = vmatpush1.msra.mxu0 0.0
      %593 = vmatprep.subr.mxu0 0.0
      %594 = vmatpush1.msra.mxu0 0.0
      %595 = vmatprep.mubr.f32.mxu0 0.0
      %596 = vmatmul.mubr.f32.gmra.mrb[0].mxu0 %v523
      %v597 = vpop.f32.mrb[0].mxu0
      %v598 = vadd.f32 0.0, %v597
      %v599 = vpop.f32.mrb[0].mxu0
      %v600 = vadd.f32 0.0, %v599
      %601 = vdwg.mxu0
      %602 = vmatprep.subr.mxu0 0.0
      %603 = vmatpush1.msra.mxu0 %v529
      %604 = vmatprep.subr.mxu0 0.0
      %605 = vmatpush1.msra.mxu0 0.0
      %606 = vmatprep.subr.mxu0 0.0
      %607 = vmatpush1.msra.mxu0 0.0
      %608 = vmatprep.subr.mxu0 0.0
      %609 = vmatpush1.msra.mxu0 0.0
      %610 = vmatprep.subr.mxu0 0.0
      %611 = vmatpush1.msra.mxu0 0.0
      %612 = vmatprep.subr.mxu0 0.0
      %613 = vmatpush1.msra.mxu0 0.0
      %614 = vmatprep.subr.mxu0 0.0
      %615 = vmatpush1.msra.mxu0 0.0
      %616 = vmatprep.subr.mxu0 0.0
      %617 = vmatpush1.msra.mxu0 0.0
      %618 = vmatprep.subr.mxu0 0.0
      %619 = vmatpush1.msra.mxu0 0.0
      %620 = vmatprep.subr.mxu0 0.0
      %621 = vmatpush1.msra.mxu0 0.0
      %622 = vmatprep.subr.mxu0 0.0
      %623 = vmatpush1.msra.mxu0 0.0
      %624 = vmatprep.subr.mxu0 0.0
      %625 = vmatpush1.msra.mxu0 0.0
      %626 = vmatprep.subr.mxu0 0.0
      %627 = vmatpush1.msra.mxu0 0.0
      %628 = vmatprep.subr.mxu0 0.0
      %629 = vmatpush1.msra.mxu0 0.0
      %630 = vmatprep.subr.mxu0 0.0
      %631 = vmatpush1.msra.mxu0 0.0
      %632 = vmatprep.subr.mxu0 0.0
      %633 = vmatpush1.msra.mxu0 0.0
      %634 = vmatprep.subr.mxu0 0.0
      %635 = vmatpush1.msra.mxu0 0.0
      %636 = vmatprep.subr.mxu0 0.0
      %637 = vmatpush1.msra.mxu0 0.0
      %638 = vmatprep.subr.mxu0 0.0
      %639 = vmatpush1.msra.mxu0 0.0
      %640 = vmatprep.subr.mxu0 0.0
      %641 = vmatpush1.msra.mxu0 0.0
      %642 = vmatprep.subr.mxu0 0.0
      %643 = vmatpush1.msra.mxu0 0.0
      %644 = vmatprep.subr.mxu0 0.0
      %645 = vmatpush1.msra.mxu0 0.0
      %646 = vmatprep.subr.mxu0 0.0
      %647 = vmatpush1.msra.mxu0 0.0
      %648 = vmatprep.subr.mxu0 0.0
      %649 = vmatpush1.msra.mxu0 0.0
      %650 = vmatprep.subr.mxu0 0.0
      %651 = vmatpush1.msra.mxu0 0.0
      %652 = vmatprep.subr.mxu0 0.0
      %653 = vmatpush1.msra.mxu0 0.0
      %654 = vmatprep.subr.mxu0 0.0
      %655 = vmatpush1.msra.mxu0 0.0
      %656 = vmatprep.subr.mxu0 0.0
      %657 = vmatpush1.msra.mxu0 0.0
      %658 = vmatprep.subr.mxu0 0.0
      %659 = vmatpush1.msra.mxu0 0.0
      %660 = vmatprep.subr.mxu0 0.0
      %661 = vmatpush1.msra.mxu0 0.0
      %662 = vmatprep.subr.mxu0 0.0
      %663 = vmatpush1.msra.mxu0 0.0
      %664 = vmatprep.subr.mxu0 0.0
      %665 = vmatpush1.msra.mxu0 0.0
      %666 = vmatprep.mubr.f32.mxu0 0.0
      %667 = vmatmul.mubr.f32.gmra.mrb[0].mxu0 %v523
      %v668 = vpop.f32.mrb[0].mxu0
      %v669 = vadd.f32 0.0, %v668
      %v670 = vpop.f32.mrb[0].mxu0
      %671 = vdwg.mxu0
      %v672 = vadd.f32 %v505, %v598
      %v673 = vadd.f32 %v506, %v600
      %v674 = vadd.f32 %v507, %v669
      %s675 = scalar_lea.vmem %s1, 24
      %v676 = vld [vmem:[%s675] sm:$0xff]
      %677 = vrot.lane.b32.xlu0 %v173, 110
      %v678 = vpop.permute.xlu0 %677
      %679 = vrot.lane.b32.xlu0 %v184, 110
      %v680 = vpop.permute.xlu0 %679
      %681 = vrot.lane.b32.xlu0 %v174, 110
      %v682 = vpop.permute.xlu0 %681
      %683 = vrot.lane.b32.xlu0 %v342, 110
      %v684 = vpop.permute.xlu0 %683
      %vm685 = vcmask 900096
      %v686 = vsel %vm685, %v678, %v680
      %v687 = vsel %vm685, %v680, %v682
      %v688 = vsel %vm685, %v682, %v684
      %v690 = vsel %vm185, %v676, 0
      %v692 = vsel %vm189, %v686, 0
      %v694 = vsel %vm189, %v687, 0
      %v696 = vsel %vm189, %v688, 0
      %698 = vmatprep.subr.mxu0 %v694
      %699 = vmatpush1.msra.mxu0 %v692
      %700 = vmatprep.subr.mxu0 0.0
      %701 = vmatpush1.msra.mxu0 0.0
      %702 = vmatprep.subr.mxu0 0.0
      %703 = vmatpush1.msra.mxu0 0.0
      %704 = vmatprep.subr.mxu0 0.0
      %705 = vmatpush1.msra.mxu0 0.0
      %706 = vmatprep.subr.mxu0 0.0
      %707 = vmatpush1.msra.mxu0 0.0
      %708 = vmatprep.subr.mxu0 0.0
      %709 = vmatpush1.msra.mxu0 0.0
      %710 = vmatprep.subr.mxu0 0.0
      %711 = vmatpush1.msra.mxu0 0.0
      %712 = vmatprep.subr.mxu0 0.0
      %713 = vmatpush1.msra.mxu0 0.0
      %714 = vmatprep.subr.mxu0 0.0
      %715 = vmatpush1.msra.mxu0 0.0
      %716 = vmatprep.subr.mxu0 0.0
      %717 = vmatpush1.msra.mxu0 0.0
      %718 = vmatprep.subr.mxu0 0.0
      %719 = vmatpush1.msra.mxu0 0.0
      %720 = vmatprep.subr.mxu0 0.0
      %721 = vmatpush1.msra.mxu0 0.0
      %722 = vmatprep.subr.mxu0 0.0
      %723 = vmatpush1.msra.mxu0 0.0
      %724 = vmatprep.subr.mxu0 0.0
      %725 = vmatpush1.msra.mxu0 0.0
      %726 = vmatprep.subr.mxu0 0.0
      %727 = vmatpush1.msra.mxu0 0.0
      %728 = vmatprep.subr.mxu0 0.0
      %729 = vmatpush1.msra.mxu0 0.0
      %730 = vmatprep.subr.mxu0 0.0
      %731 = vmatpush1.msra.mxu0 0.0
      %732 = vmatprep.subr.mxu0 0.0
      %733 = vmatpush1.msra.mxu0 0.0
      %734 = vmatprep.subr.mxu0 0.0
      %735 = vmatpush1.msra.mxu0 0.0
      %736 = vmatprep.subr.mxu0 0.0
      %737 = vmatpush1.msra.mxu0 0.0
      %738 = vmatprep.subr.mxu0 0.0
      %739 = vmatpush1.msra.mxu0 0.0
      %740 = vmatprep.subr.mxu0 0.0
      %741 = vmatpush1.msra.mxu0 0.0
      %742 = vmatprep.subr.mxu0 0.0
      %743 = vmatpush1.msra.mxu0 0.0
      %744 = vmatprep.subr.mxu0 0.0
      %745 = vmatpush1.msra.mxu0 0.0
      %746 = vmatprep.subr.mxu0 0.0
      %747 = vmatpush1.msra.mxu0 0.0
      %748 = vmatprep.subr.mxu0 0.0
      %749 = vmatpush1.msra.mxu0 0.0
      %750 = vmatprep.subr.mxu0 0.0
      %751 = vmatpush1.msra.mxu0 0.0
      %752 = vmatprep.subr.mxu0 0.0
      %753 = vmatpush1.msra.mxu0 0.0
      %754 = vmatprep.subr.mxu0 0.0
      %755 = vmatpush1.msra.mxu0 0.0
      %756 = vmatprep.subr.mxu0 0.0
      %757 = vmatpush1.msra.mxu0 0.0
      %758 = vmatprep.subr.mxu0 0.0
      %759 = vmatpush1.msra.mxu0 0.0
      %760 = vmatprep.subr.mxu0 0.0
      %761 = vmatpush1.msra.mxu0 0.0
      %762 = vmatprep.mubr.f32.mxu0 0.0
      %763 = vmatmul.mubr.f32.gmra.mrb[0].mxu0 %v690
      %v764 = vpop.f32.mrb[0].mxu0
      %v765 = vadd.f32 0.0, %v764
      %v766 = vpop.f32.mrb[0].mxu0
      %v767 = vadd.f32 0.0, %v766
      %768 = vdwg.mxu0
      %769 = vmatprep.subr.mxu0 0.0
      %770 = vmatpush1.msra.mxu0 %v696
      %771 = vmatprep.subr.mxu0 0.0
      %772 = vmatpush1.msra.mxu0 0.0
      %773 = vmatprep.subr.mxu0 0.0
      %774 = vmatpush1.msra.mxu0 0.0
      %775 = vmatprep.subr.mxu0 0.0
      %776 = vmatpush1.msra.mxu0 0.0
      %777 = vmatprep.subr.mxu0 0.0
      %778 = vmatpush1.msra.mxu0 0.0
      %779 = vmatprep.subr.mxu0 0.0
      %780 = vmatpush1.msra.mxu0 0.0
      %781 = vmatprep.subr.mxu0 0.0
      %782 = vmatpush1.msra.mxu0 0.0
      %783 = vmatprep.subr.mxu0 0.0
      %784 = vmatpush1.msra.mxu0 0.0
      %785 = vmatprep.subr.mxu0 0.0
      %786 = vmatpush1.msra.mxu0 0.0
      %787 = vmatprep.subr.mxu0 0.0
      %788 = vmatpush1.msra.mxu0 0.0
      %789 = vmatprep.subr.mxu0 0.0
      %790 = vmatpush1.msra.mxu0 0.0
      %791 = vmatprep.subr.mxu0 0.0
      %792 = vmatpush1.msra.mxu0 0.0
      %793 = vmatprep.subr.mxu0 0.0
      %794 = vmatpush1.msra.mxu0 0.0
      %795 = vmatprep.subr.mxu0 0.0
      %796 = vmatpush1.msra.mxu0 0.0
      %797 = vmatprep.subr.mxu0 0.0
      %798 = vmatpush1.msra.mxu0 0.0
      %799 = vmatprep.subr.mxu0 0.0
      %800 = vmatpush1.msra.mxu0 0.0
      %801 = vmatprep.subr.mxu0 0.0
      %802 = vmatpush1.msra.mxu0 0.0
      %803 = vmatprep.subr.mxu0 0.0
      %804 = vmatpush1.msra.mxu0 0.0
      %805 = vmatprep.subr.mxu0 0.0
      %806 = vmatpush1.msra.mxu0 0.0
      %807 = vmatprep.subr.mxu0 0.0
      %808 = vmatpush1.msra.mxu0 0.0
      %809 = vmatprep.subr.mxu0 0.0
      %810 = vmatpush1.msra.mxu0 0.0
      %811 = vmatprep.subr.mxu0 0.0
      %812 = vmatpush1.msra.mxu0 0.0
      %813 = vmatprep.subr.mxu0 0.0
      %814 = vmatpush1.msra.mxu0 0.0
      %815 = vmatprep.subr.mxu0 0.0
      %816 = vmatpush1.msra.mxu0 0.0
      %817 = vmatprep.subr.mxu0 0.0
      %818 = vmatpush1.msra.mxu0 0.0
      %819 = vmatprep.subr.mxu0 0.0
      %820 = vmatpush1.msra.mxu0 0.0
      %821 = vmatprep.subr.mxu0 0.0
      %822 = vmatpush1.msra.mxu0 0.0
      %823 = vmatprep.subr.mxu0 0.0
      %824 = vmatpush1.msra.mxu0 0.0
      %825 = vmatprep.subr.mxu0 0.0
      %826 = vmatpush1.msra.mxu0 0.0
      %827 = vmatprep.subr.mxu0 0.0
      %828 = vmatpush1.msra.mxu0 0.0
      %829 = vmatprep.subr.mxu0 0.0
      %830 = vmatpush1.msra.mxu0 0.0
      %831 = vmatprep.subr.mxu0 0.0
      %832 = vmatpush1.msra.mxu0 0.0
      %833 = vmatprep.mubr.f32.mxu0 0.0
      %834 = vmatmul.mubr.f32.gmra.mrb[0].mxu0 %v690
      %v835 = vpop.f32.mrb[0].mxu0
      %v836 = vadd.f32 0.0, %v835
      %v837 = vpop.f32.mrb[0].mxu0
      %838 = vdwg.mxu0
      %v839 = vadd.f32 %v672, %v765
      %v840 = vadd.f32 %v673, %v767
      %v841 = vadd.f32 %v674, %v836
      %s842 = scalar_lea.vmem %s1, 32
      %v843 = vld [vmem:[%s842] sm:$0xff]
      %844 = vrot.lane.b32.xlu0 %v173, 109
      %v845 = vpop.permute.xlu0 %844
      %846 = vrot.lane.b32.xlu0 %v184, 109
      %v847 = vpop.permute.xlu0 %846
      %848 = vrot.lane.b32.xlu0 %v174, 109
      %v849 = vpop.permute.xlu0 %848
      %850 = vrot.lane.b32.xlu0 %v342, 109
      %v851 = vpop.permute.xlu0 %850
      %vm852 = vcmask 891904
      %v853 = vsel %vm852, %v845, %v847
      %v854 = vsel %vm852, %v847, %v849
      %v855 = vsel %vm852, %v849, %v851
      %v857 = vsel %vm185, %v843, 0
      %v859 = vsel %vm189, %v853, 0
      %v861 = vsel %vm189, %v854, 0
      %v863 = vsel %vm189, %v855, 0
      %865 = vmatprep.subr.mxu0 %v861
      %866 = vmatpush1.msra.mxu0 %v859
      %867 = vmatprep.subr.mxu0 0.0
      %868 = vmatpush1.msra.mxu0 0.0
      %869 = vmatprep.subr.mxu0 0.0
      %870 = vmatpush1.msra.mxu0 0.0
      %871 = vmatprep.subr.mxu0 0.0
      %872 = vmatpush1.msra.mxu0 0.0
      %873 = vmatprep.subr.mxu0 0.0
      %874 = vmatpush1.msra.mxu0 0.0
      %875 = vmatprep.subr.mxu0 0.0
      %876 = vmatpush1.msra.mxu0 0.0
      %877 = vmatprep.subr.mxu0 0.0
      %878 = vmatpush1.msra.mxu0 0.0
      %879 = vmatprep.subr.mxu0 0.0
      %880 = vmatpush1.msra.mxu0 0.0
      %881 = vmatprep.subr.mxu0 0.0
      %882 = vmatpush1.msra.mxu0 0.0
      %883 = vmatprep.subr.mxu0 0.0
      %884 = vmatpush1.msra.mxu0 0.0
      %885 = vmatprep.subr.mxu0 0.0
      %886 = vmatpush1.msra.mxu0 0.0
      %887 = vmatprep.subr.mxu0 0.0
      %888 = vmatpush1.msra.mxu0 0.0
      %889 = vmatprep.subr.mxu0 0.0
      %890 = vmatpush1.msra.mxu0 0.0
      %891 = vmatprep.subr.mxu0 0.0
      %892 = vmatpush1.msra.mxu0 0.0
      %893 = vmatprep.subr.mxu0 0.0
      %894 = vmatpush1.msra.mxu0 0.0
      %895 = vmatprep.subr.mxu0 0.0
      %896 = vmatpush1.msra.mxu0 0.0
      %897 = vmatprep.subr.mxu0 0.0
      %898 = vmatpush1.msra.mxu0 0.0
      %899 = vmatprep.subr.mxu0 0.0
      %900 = vmatpush1.msra.mxu0 0.0
      %901 = vmatprep.subr.mxu0 0.0
      %902 = vmatpush1.msra.mxu0 0.0
      %903 = vmatprep.subr.mxu0 0.0
      %904 = vmatpush1.msra.mxu0 0.0
      %905 = vmatprep.subr.mxu0 0.0
      %906 = vmatpush1.msra.mxu0 0.0
      %907 = vmatprep.subr.mxu0 0.0
      %908 = vmatpush1.msra.mxu0 0.0
      %909 = vmatprep.subr.mxu0 0.0
      %910 = vmatpush1.msra.mxu0 0.0
      %911 = vmatprep.subr.mxu0 0.0
      %912 = vmatpush1.msra.mxu0 0.0
      %913 = vmatprep.subr.mxu0 0.0
      %914 = vmatpush1.msra.mxu0 0.0
      %915 = vmatprep.subr.mxu0 0.0
      %916 = vmatpush1.msra.mxu0 0.0
      %917 = vmatprep.subr.mxu0 0.0
      %918 = vmatpush1.msra.mxu0 0.0
      %919 = vmatprep.subr.mxu0 0.0
      %920 = vmatpush1.msra.mxu0 0.0
      %921 = vmatprep.subr.mxu0 0.0
      %922 = vmatpush1.msra.mxu0 0.0
      %923 = vmatprep.subr.mxu0 0.0
      %924 = vmatpush1.msra.mxu0 0.0
      %925 = vmatprep.subr.mxu0 0.0
      %926 = vmatpush1.msra.mxu0 0.0
      %927 = vmatprep.subr.mxu0 0.0
      %928 = vmatpush1.msra.mxu0 0.0
      %929 = vmatprep.mubr.f32.mxu0 0.0
      %930 = vmatmul.mubr.f32.gmra.mrb[0].mxu0 %v857
      %v931 = vpop.f32.mrb[0].mxu0
      %v932 = vadd.f32 0.0, %v931
      %v933 = vpop.f32.mrb[0].mxu0
      %v934 = vadd.f32 0.0, %v933
      %935 = vdwg.mxu0
      %936 = vmatprep.subr.mxu0 0.0
      %937 = vmatpush1.msra.mxu0 %v863
      %938 = vmatprep.subr.mxu0 0.0
      %939 = vmatpush1.msra.mxu0 0.0
      %940 = vmatprep.subr.mxu0 0.0
      %941 = vmatpush1.msra.mxu0 0.0
      %942 = vmatprep.subr.mxu0 0.0
      %943 = vmatpush1.msra.mxu0 0.0
      %944 = vmatprep.subr.mxu0 0.0
      %945 = vmatpush1.msra.mxu0 0.0
      %946 = vmatprep.subr.mxu0 0.0
      %947 = vmatpush1.msra.mxu0 0.0
      %948 = vmatprep.subr.mxu0 0.0
      %949 = vmatpush1.msra.mxu0 0.0
      %950 = vmatprep.subr.mxu0 0.0
      %951 = vmatpush1.msra.mxu0 0.0
      %952 = vmatprep.subr.mxu0 0.0
      %953 = vmatpush1.msra.mxu0 0.0
      %954 = vmatprep.subr.mxu0 0.0
      %955 = vmatpush1.msra.mxu0 0.0
      %956 = vmatprep.subr.mxu0 0.0
      %957 = vmatpush1.msra.mxu0 0.0
      %958 = vmatprep.subr.mxu0 0.0
      %959 = vmatpush1.msra.mxu0 0.0
      %960 = vmatprep.subr.mxu0 0.0
      %961 = vmatpush1.msra.mxu0 0.0
      %962 = vmatprep.subr.mxu0 0.0
      %963 = vmatpush1.msra.mxu0 0.0
      %964 = vmatprep.subr.mxu0 0.0
      %965 = vmatpush1.msra.mxu0 0.0
      %966 = vmatprep.subr.mxu0 0.0
      %967 = vmatpush1.msra.mxu0 0.0
      %968 = vmatprep.subr.mxu0 0.0
      %969 = vmatpush1.msra.mxu0 0.0
      %970 = vmatprep.subr.mxu0 0.0
      %971 = vmatpush1.msra.mxu0 0.0
      %972 = vmatprep.subr.mxu0 0.0
      %973 = vmatpush1.msra.mxu0 0.0
      %974 = vmatprep.subr.mxu0 0.0
      %975 = vmatpush1.msra.mxu0 0.0
      %976 = vmatprep.subr.mxu0 0.0
      %977 = vmatpush1.msra.mxu0 0.0
      %978 = vmatprep.subr.mxu0 0.0
      %979 = vmatpush1.msra.mxu0 0.0
      %980 = vmatprep.subr.mxu0 0.0
      %981 = vmatpush1.msra.mxu0 0.0
      %982 = vmatprep.subr.mxu0 0.0
      %983 = vmatpush1.msra.mxu0 0.0
      %984 = vmatprep.subr.mxu0 0.0
      %985 = vmatpush1.msra.mxu0 0.0
      %986 = vmatprep.subr.mxu0 0.0
      %987 = vmatpush1.msra.mxu0 0.0
      %988 = vmatprep.subr.mxu0 0.0
      %989 = vmatpush1.msra.mxu0 0.0
      %990 = vmatprep.subr.mxu0 0.0
      %991 = vmatpush1.msra.mxu0 0.0
      %992 = vmatprep.subr.mxu0 0.0
      %993 = vmatpush1.msra.mxu0 0.0
      %994 = vmatprep.subr.mxu0 0.0
      %995 = vmatpush1.msra.mxu0 0.0
      %996 = vmatprep.subr.mxu0 0.0
      %997 = vmatpush1.msra.mxu0 0.0
      %998 = vmatprep.subr.mxu0 0.0
      %999 = vmatpush1.msra.mxu0 0.0
      %1000 = vmatprep.mubr.f32.mxu0 0.0
      %1001 = vmatmul.mubr.f32.gmra.mrb[0].mxu0 %v857
      %v1002 = vpop.f32.mrb[0].mxu0
      %v1003 = vadd.f32 0.0, %v1002
      %v1004 = vpop.f32.mrb[0].mxu0
      %1005 = vdwg.mxu0
      %v1006 = vadd.f32 %v839, %v932
      %v1007 = vadd.f32 %v840, %v934
      %v1008 = vadd.f32 %v841, %v1003
      %s1009 = scalar_lea.vmem %s1, 40
      %v1010 = vld [vmem:[%s1009] sm:$0xff]
      %1011 = vrot.lane.b32.xlu0 %v173, 108
      %v1012 = vpop.permute.xlu0 %1011
      %1013 = vrot.lane.b32.xlu0 %v184, 108
      %v1014 = vpop.permute.xlu0 %1013
      %1015 = vrot.lane.b32.xlu0 %v174, 108
      %v1016 = vpop.permute.xlu0 %1015
      %1017 = vrot.lane.b32.xlu0 %v342, 108
      %v1018 = vpop.permute.xlu0 %1017
      %vm1019 = vcmask 883712
      %v1020 = vsel %vm1019, %v1012, %v1014
      %v1021 = vsel %vm1019, %v1014, %v1016
      %v1022 = vsel %vm1019, %v1016, %v1018
      %v1024 = vsel %vm185, %v1010, 0
      %v1026 = vsel %vm189, %v1020, 0
      %v1028 = vsel %vm189, %v1021, 0
      %v1030 = vsel %vm189, %v1022, 0
      %1032 = vmatprep.subr.mxu0 %v1028
      %1033 = vmatpush1.msra.mxu0 %v1026
      %1034 = vmatprep.subr.mxu0 0.0
      %1035 = vmatpush1.msra.mxu0 0.0
      %1036 = vmatprep.subr.mxu0 0.0
      %1037 = vmatpush1.msra.mxu0 0.0
      %1038 = vmatprep.subr.mxu0 0.0
      %1039 = vmatpush1.msra.mxu0 0.0
      %1040 = vmatprep.subr.mxu0 0.0
      %1041 = vmatpush1.msra.mxu0 0.0
      %1042 = vmatprep.subr.mxu0 0.0
      %1043 = vmatpush1.msra.mxu0 0.0
      %1044 = vmatprep.subr.mxu0 0.0
      %1045 = vmatpush1.msra.mxu0 0.0
      %1046 = vmatprep.subr.mxu0 0.0
      %1047 = vmatpush1.msra.mxu0 0.0
      %1048 = vmatprep.subr.mxu0 0.0
      %1049 = vmatpush1.msra.mxu0 0.0
      %1050 = vmatprep.subr.mxu0 0.0
      %1051 = vmatpush1.msra.mxu0 0.0
      %1052 = vmatprep.subr.mxu0 0.0
      %1053 = vmatpush1.msra.mxu0 0.0
      %1054 = vmatprep.subr.mxu0 0.0
      %1055 = vmatpush1.msra.mxu0 0.0
      %1056 = vmatprep.subr.mxu0 0.0
      %1057 = vmatpush1.msra.mxu0 0.0
      %1058 = vmatprep.subr.mxu0 0.0
      %1059 = vmatpush1.msra.mxu0 0.0
      %1060 = vmatprep.subr.mxu0 0.0
      %1061 = vmatpush1.msra.mxu0 0.0
      %1062 = vmatprep.subr.mxu0 0.0
      %1063 = vmatpush1.msra.mxu0 0.0
      %1064 = vmatprep.subr.mxu0 0.0
      %1065 = vmatpush1.msra.mxu0 0.0
      %1066 = vmatprep.subr.mxu0 0.0
      %1067 = vmatpush1.msra.mxu0 0.0
      %1068 = vmatprep.subr.mxu0 0.0
      %1069 = vmatpush1.msra.mxu0 0.0
      %1070 = vmatprep.subr.mxu0 0.0
      %1071 = vmatpush1.msra.mxu0 0.0
      %1072 = vmatprep.subr.mxu0 0.0
      %1073 = vmatpush1.msra.mxu0 0.0
      %1074 = vmatprep.subr.mxu0 0.0
      %1075 = vmatpush1.msra.mxu0 0.0
      %1076 = vmatprep.subr.mxu0 0.0
      %1077 = vmatpush1.msra.mxu0 0.0
      %1078 = vmatprep.subr.mxu0 0.0
      %1079 = vmatpush1.msra.mxu0 0.0
      %1080 = vmatprep.subr.mxu0 0.0
      %1081 = vmatpush1.msra.mxu0 0.0
      %1082 = vmatprep.subr.mxu0 0.0
      %1083 = vmatpush1.msra.mxu0 0.0
      %1084 = vmatprep.subr.mxu0 0.0
      %1085 = vmatpush1.msra.mxu0 0.0
      %1086 = vmatprep.subr.mxu0 0.0
      %1087 = vmatpush1.msra.mxu0 0.0
      %1088 = vmatprep.subr.mxu0 0.0
      %1089 = vmatpush1.msra.mxu0 0.0
      %1090 = vmatprep.subr.mxu0 0.0
      %1091 = vmatpush1.msra.mxu0 0.0
      %1092 = vmatprep.subr.mxu0 0.0
      %1093 = vmatpush1.msra.mxu0 0.0
      %1094 = vmatprep.subr.mxu0 0.0
      %1095 = vmatpush1.msra.mxu0 0.0
      %1096 = vmatprep.mubr.f32.mxu0 0.0
      %1097 = vmatmul.mubr.f32.gmra.mrb[0].mxu0 %v1024
      %v1098 = vpop.f32.mrb[0].mxu0
      %v1099 = vadd.f32 0.0, %v1098
      %v1100 = vpop.f32.mrb[0].mxu0
      %v1101 = vadd.f32 0.0, %v1100
      %1102 = vdwg.mxu0
      %1103 = vmatprep.subr.mxu0 0.0
      %1104 = vmatpush1.msra.mxu0 %v1030
      %1105 = vmatprep.subr.mxu0 0.0
      %1106 = vmatpush1.msra.mxu0 0.0
      %1107 = vmatprep.subr.mxu0 0.0
      %1108 = vmatpush1.msra.mxu0 0.0
      %1109 = vmatprep.subr.mxu0 0.0
      %1110 = vmatpush1.msra.mxu0 0.0
      %1111 = vmatprep.subr.mxu0 0.0
      %1112 = vmatpush1.msra.mxu0 0.0
      %1113 = vmatprep.subr.mxu0 0.0
      %1114 = vmatpush1.msra.mxu0 0.0
      %1115 = vmatprep.subr.mxu0 0.0
      %1116 = vmatpush1.msra.mxu0 0.0
      %1117 = vmatprep.subr.mxu0 0.0
      %1118 = vmatpush1.msra.mxu0 0.0
      %1119 = vmatprep.subr.mxu0 0.0
      %1120 = vmatpush1.msra.mxu0 0.0
      %1121 = vmatprep.subr.mxu0 0.0
      %1122 = vmatpush1.msra.mxu0 0.0
      %1123 = vmatprep.subr.mxu0 0.0
      %1124 = vmatpush1.msra.mxu0 0.0
      %1125 = vmatprep.subr.mxu0 0.0
      %1126 = vmatpush1.msra.mxu0 0.0
      %1127 = vmatprep.subr.mxu0 0.0
      %1128 = vmatpush1.msra.mxu0 0.0
      %1129 = vmatprep.subr.mxu0 0.0
      %1130 = vmatpush1.msra.mxu0 0.0
      %1131 = vmatprep.subr.mxu0 0.0
      %1132 = vmatpush1.msra.mxu0 0.0
      %1133 = vmatprep.subr.mxu0 0.0
      %1134 = vmatpush1.msra.mxu0 0.0
      %1135 = vmatprep.subr.mxu0 0.0
      %1136 = vmatpush1.msra.mxu0 0.0
      %1137 = vmatprep.subr.mxu0 0.0
      %1138 = vmatpush1.msra.mxu0 0.0
      %1139 = vmatprep.subr.mxu0 0.0
      %1140 = vmatpush1.msra.mxu0 0.0
      %1141 = vmatprep.subr.mxu0 0.0
      %1142 = vmatpush1.msra.mxu0 0.0
      %1143 = vmatprep.subr.mxu0 0.0
      %1144 = vmatpush1.msra.mxu0 0.0
      %1145 = vmatprep.subr.mxu0 0.0
      %1146 = vmatpush1.msra.mxu0 0.0
      %1147 = vmatprep.subr.mxu0 0.0
      %1148 = vmatpush1.msra.mxu0 0.0
      %1149 = vmatprep.subr.mxu0 0.0
      %1150 = vmatpush1.msra.mxu0 0.0
      %1151 = vmatprep.subr.mxu0 0.0
      %1152 = vmatpush1.msra.mxu0 0.0
      %1153 = vmatprep.subr.mxu0 0.0
      %1154 = vmatpush1.msra.mxu0 0.0
      %1155 = vmatprep.subr.mxu0 0.0
      %1156 = vmatpush1.msra.mxu0 0.0
      %1157 = vmatprep.subr.mxu0 0.0
      %1158 = vmatpush1.msra.mxu0 0.0
      %1159 = vmatprep.subr.mxu0 0.0
      %1160 = vmatpush1.msra.mxu0 0.0
      %1161 = vmatprep.subr.mxu0 0.0
      %1162 = vmatpush1.msra.mxu0 0.0
      %1163 = vmatprep.subr.mxu0 0.0
      %1164 = vmatpush1.msra.mxu0 0.0
      %1165 = vmatprep.subr.mxu0 0.0
      %1166 = vmatpush1.msra.mxu0 0.0
      %1167 = vmatprep.mubr.f32.mxu0 0.0
      %1168 = vmatmul.mubr.f32.gmra.mrb[0].mxu0 %v1024
      %v1169 = vpop.f32.mrb[0].mxu0
      %v1170 = vadd.f32 0.0, %v1169
      %v1171 = vpop.f32.mrb[0].mxu0
      %1172 = vdwg.mxu0
      %v1173 = vadd.f32 %v1006, %v1099
      %v1174 = vadd.f32 %v1007, %v1101
      %v1175 = vadd.f32 %v1008, %v1170
      %s1176 = scalar_lea.vmem %s1, 48
      %v1177 = vld [vmem:[%s1176] sm:$0xff]
      %1178 = vrot.lane.b32.xlu0 %v173, 92
      %v1179 = vpop.permute.xlu0 %1178
      %1180 = vrot.lane.b32.xlu0 %v184, 92
      %v1181 = vpop.permute.xlu0 %1180
      %1182 = vrot.lane.b32.xlu0 %v174, 92
      %v1183 = vpop.permute.xlu0 %1182
      %1184 = vrot.lane.b32.xlu0 %v342, 92
      %v1185 = vpop.permute.xlu0 %1184
      %vm1186 = vcmask 752640
      %v1187 = vsel %vm1186, %v1179, %v1181
      %v1188 = vsel %vm1186, %v1181, %v1183
      %v1189 = vsel %vm1186, %v1183, %v1185
      %v1191 = vsel %vm185, %v1177, 0
      %v1193 = vsel %vm189, %v1187, 0
      %v1195 = vsel %vm189, %v1188, 0
      %v1197 = vsel %vm189, %v1189, 0
      %1199 = vmatprep.subr.mxu0 %v1195
      %1200 = vmatpush1.msra.mxu0 %v1193
      %1201 = vmatprep.subr.mxu0 0.0
      %1202 = vmatpush1.msra.mxu0 0.0
      %1203 = vmatprep.subr.mxu0 0.0
      %1204 = vmatpush1.msra.mxu0 0.0
      %1205 = vmatprep.subr.mxu0 0.0
      %1206 = vmatpush1.msra.mxu0 0.0
      %1207 = vmatprep.subr.mxu0 0.0
      %1208 = vmatpush1.msra.mxu0 0.0
      %1209 = vmatprep.subr.mxu0 0.0
      %1210 = vmatpush1.msra.mxu0 0.0
      %1211 = vmatprep.subr.mxu0 0.0
      %1212 = vmatpush1.msra.mxu0 0.0
      %1213 = vmatprep.subr.mxu0 0.0
      %1214 = vmatpush1.msra.mxu0 0.0
      %1215 = vmatprep.subr.mxu0 0.0
      %1216 = vmatpush1.msra.mxu0 0.0
      %1217 = vmatprep.subr.mxu0 0.0
      %1218 = vmatpush1.msra.mxu0 0.0
      %1219 = vmatprep.subr.mxu0 0.0
      %1220 = vmatpush1.msra.mxu0 0.0
      %1221 = vmatprep.subr.mxu0 0.0
      %1222 = vmatpush1.msra.mxu0 0.0
      %1223 = vmatprep.subr.mxu0 0.0
      %1224 = vmatpush1.msra.mxu0 0.0
      %1225 = vmatprep.subr.mxu0 0.0
      %1226 = vmatpush1.msra.mxu0 0.0
      %1227 = vmatprep.subr.mxu0 0.0
      %1228 = vmatpush1.msra.mxu0 0.0
      %1229 = vmatprep.subr.mxu0 0.0
      %1230 = vmatpush1.msra.mxu0 0.0
      %1231 = vmatprep.subr.mxu0 0.0
      %1232 = vmatpush1.msra.mxu0 0.0
      %1233 = vmatprep.subr.mxu0 0.0
      %1234 = vmatpush1.msra.mxu0 0.0
      %1235 = vmatprep.subr.mxu0 0.0
      %1236 = vmatpush1.msra.mxu0 0.0
      %1237 = vmatprep.subr.mxu0 0.0
      %1238 = vmatpush1.msra.mxu0 0.0
      %1239 = vmatprep.subr.mxu0 0.0
      %1240 = vmatpush1.msra.mxu0 0.0
      %1241 = vmatprep.subr.mxu0 0.0
      %1242 = vmatpush1.msra.mxu0 0.0
      %1243 = vmatprep.subr.mxu0 0.0
      %1244 = vmatpush1.msra.mxu0 0.0
      %1245 = vmatprep.subr.mxu0 0.0
      %1246 = vmatpush1.msra.mxu0 0.0
      %1247 = vmatprep.subr.mxu0 0.0
      %1248 = vmatpush1.msra.mxu0 0.0
      %1249 = vmatprep.subr.mxu0 0.0
      %1250 = vmatpush1.msra.mxu0 0.0
      %1251 = vmatprep.subr.mxu0 0.0
      %1252 = vmatpush1.msra.mxu0 0.0
      %1253 = vmatprep.subr.mxu0 0.0
      %1254 = vmatpush1.msra.mxu0 0.0
      %1255 = vmatprep.subr.mxu0 0.0
      %1256 = vmatpush1.msra.mxu0 0.0
      %1257 = vmatprep.subr.mxu0 0.0
      %1258 = vmatpush1.msra.mxu0 0.0
      %1259 = vmatprep.subr.mxu0 0.0
      %1260 = vmatpush1.msra.mxu0 0.0
      %1261 = vmatprep.subr.mxu0 0.0
      %1262 = vmatpush1.msra.mxu0 0.0
      %1263 = vmatprep.mubr.f32.mxu0 0.0
      %1264 = vmatmul.mubr.f32.gmra.mrb[0].mxu0 %v1191
      %v1265 = vpop.f32.mrb[0].mxu0
      %v1266 = vadd.f32 0.0, %v1265
      %v1267 = vpop.f32.mrb[0].mxu0
      %v1268 = vadd.f32 0.0, %v1267
      %1269 = vdwg.mxu0
      %1270 = vmatprep.subr.mxu0 0.0
      %1271 = vmatpush1.msra.mxu0 %v1197
      %1272 = vmatprep.subr.mxu0 0.0
      %1273 = vmatpush1.msra.mxu0 0.0
      %1274 = vmatprep.subr.mxu0 0.0
      %1275 = vmatpush1.msra.mxu0 0.0
      %1276 = vmatprep.subr.mxu0 0.0
      %1277 = vmatpush1.msra.mxu0 0.0
      %1278 = vmatprep.subr.mxu0 0.0
      %1279 = vmatpush1.msra.mxu0 0.0
      %1280 = vmatprep.subr.mxu0 0.0
      %1281 = vmatpush1.msra.mxu0 0.0
      %1282 = vmatprep.subr.mxu0 0.0
      %1283 = vmatpush1.msra.mxu0 0.0
      %1284 = vmatprep.subr.mxu0 0.0
      %1285 = vmatpush1.msra.mxu0 0.0
      %1286 = vmatprep.subr.mxu0 0.0
      %1287 = vmatpush1.msra.mxu0 0.0
      %1288 = vmatprep.subr.mxu0 0.0
      %1289 = vmatpush1.msra.mxu0 0.0
      %1290 = vmatprep.subr.mxu0 0.0
      %1291 = vmatpush1.msra.mxu0 0.0
      %1292 = vmatprep.subr.mxu0 0.0
      %1293 = vmatpush1.msra.mxu0 0.0
      %1294 = vmatprep.subr.mxu0 0.0
      %1295 = vmatpush1.msra.mxu0 0.0
      %1296 = vmatprep.subr.mxu0 0.0
      %1297 = vmatpush1.msra.mxu0 0.0
      %1298 = vmatprep.subr.mxu0 0.0
      %1299 = vmatpush1.msra.mxu0 0.0
      %1300 = vmatprep.subr.mxu0 0.0
      %1301 = vmatpush1.msra.mxu0 0.0
      %1302 = vmatprep.subr.mxu0 0.0
      %1303 = vmatpush1.msra.mxu0 0.0
      %1304 = vmatprep.subr.mxu0 0.0
      %1305 = vmatpush1.msra.mxu0 0.0
      %1306 = vmatprep.subr.mxu0 0.0
      %1307 = vmatpush1.msra.mxu0 0.0
      %1308 = vmatprep.subr.mxu0 0.0
      %1309 = vmatpush1.msra.mxu0 0.0
      %1310 = vmatprep.subr.mxu0 0.0
      %1311 = vmatpush1.msra.mxu0 0.0
      %1312 = vmatprep.subr.mxu0 0.0
      %1313 = vmatpush1.msra.mxu0 0.0
      %1314 = vmatprep.subr.mxu0 0.0
      %1315 = vmatpush1.msra.mxu0 0.0
      %1316 = vmatprep.subr.mxu0 0.0
      %1317 = vmatpush1.msra.mxu0 0.0
      %1318 = vmatprep.subr.mxu0 0.0
      %1319 = vmatpush1.msra.mxu0 0.0
      %1320 = vmatprep.subr.mxu0 0.0
      %1321 = vmatpush1.msra.mxu0 0.0
      %1322 = vmatprep.subr.mxu0 0.0
      %1323 = vmatpush1.msra.mxu0 0.0
      %1324 = vmatprep.subr.mxu0 0.0
      %1325 = vmatpush1.msra.mxu0 0.0
      %1326 = vmatprep.subr.mxu0 0.0
      %1327 = vmatpush1.msra.mxu0 0.0
      %1328 = vmatprep.subr.mxu0 0.0
      %1329 = vmatpush1.msra.mxu0 0.0
      %1330 = vmatprep.subr.mxu0 0.0
      %1331 = vmatpush1.msra.mxu0 0.0
      %1332 = vmatprep.subr.mxu0 0.0
      %1333 = vmatpush1.msra.mxu0 0.0
      %1334 = vmatprep.mubr.f32.mxu0 0.0
      %1335 = vmatmul.mubr.f32.gmra.mrb[0].mxu0 %v1191
      %v1336 = vpop.f32.mrb[0].mxu0
      %v1337 = vadd.f32 0.0, %v1336
      %v1338 = vpop.f32.mrb[0].mxu0
      %1339 = vdwg.mxu0
      %v1340 = vadd.f32 %v1173, %v1266
      %v1341 = vadd.f32 %v1174, %v1268
      %v1342 = vadd.f32 %v1175, %v1337
      %s1343 = scalar_lea.vmem %s1, 56
      %v1344 = vld [vmem:[%s1343] sm:$0xff]
      %1345 = vrot.lane.b32.xlu0 %v173, 91
      %v1346 = vpop.permute.xlu0 %1345
      %1347 = vrot.lane.b32.xlu0 %v184, 91
      %v1348 = vpop.permute.xlu0 %1347
      %1349 = vrot.lane.b32.xlu0 %v174, 91
      %v1350 = vpop.permute.xlu0 %1349
      %1351 = vrot.lane.b32.xlu0 %v342, 91
      %v1352 = vpop.permute.xlu0 %1351
      %vm1353 = vcmask 744448
      %v1354 = vsel %vm1353, %v1346, %v1348
      %v1355 = vsel %vm1353, %v1348, %v1350
      %v1356 = vsel %vm1353, %v1350, %v1352
      %v1358 = vsel %vm185, %v1344, 0
      %v1360 = vsel %vm189, %v1354, 0
      %v1362 = vsel %vm189, %v1355, 0
      %v1364 = vsel %vm189, %v1356, 0
      %1366 = vmatprep.subr.mxu0 %v1362
      %1367 = vmatpush1.msra.mxu0 %v1360
      %1368 = vmatprep.subr.mxu0 0.0
      %1369 = vmatpush1.msra.mxu0 0.0
      %1370 = vmatprep.subr.mxu0 0.0
      %1371 = vmatpush1.msra.mxu0 0.0
      %1372 = vmatprep.subr.mxu0 0.0
      %1373 = vmatpush1.msra.mxu0 0.0
      %1374 = vmatprep.subr.mxu0 0.0
      %1375 = vmatpush1.msra.mxu0 0.0
      %1376 = vmatprep.subr.mxu0 0.0
      %1377 = vmatpush1.msra.mxu0 0.0
      %1378 = vmatprep.subr.mxu0 0.0
      %1379 = vmatpush1.msra.mxu0 0.0
      %1380 = vmatprep.subr.mxu0 0.0
      %1381 = vmatpush1.msra.mxu0 0.0
      %1382 = vmatprep.subr.mxu0 0.0
      %1383 = vmatpush1.msra.mxu0 0.0
      %1384 = vmatprep.subr.mxu0 0.0
      %1385 = vmatpush1.msra.mxu0 0.0
      %1386 = vmatprep.subr.mxu0 0.0
      %1387 = vmatpush1.msra.mxu0 0.0
      %1388 = vmatprep.subr.mxu0 0.0
      %1389 = vmatpush1.msra.mxu0 0.0
      %1390 = vmatprep.subr.mxu0 0.0
      %1391 = vmatpush1.msra.mxu0 0.0
      %1392 = vmatprep.subr.mxu0 0.0
      %1393 = vmatpush1.msra.mxu0 0.0
      %1394 = vmatprep.subr.mxu0 0.0
      %1395 = vmatpush1.msra.mxu0 0.0
      %1396 = vmatprep.subr.mxu0 0.0
      %1397 = vmatpush1.msra.mxu0 0.0
      %1398 = vmatprep.subr.mxu0 0.0
      %1399 = vmatpush1.msra.mxu0 0.0
      %1400 = vmatprep.subr.mxu0 0.0
      %1401 = vmatpush1.msra.mxu0 0.0
      %1402 = vmatprep.subr.mxu0 0.0
      %1403 = vmatpush1.msra.mxu0 0.0
      %1404 = vmatprep.subr.mxu0 0.0
      %1405 = vmatpush1.msra.mxu0 0.0
      %1406 = vmatprep.subr.mxu0 0.0
      %1407 = vmatpush1.msra.mxu0 0.0
      %1408 = vmatprep.subr.mxu0 0.0
      %1409 = vmatpush1.msra.mxu0 0.0
      %1410 = vmatprep.subr.mxu0 0.0
      %1411 = vmatpush1.msra.mxu0 0.0
      %1412 = vmatprep.subr.mxu0 0.0
      %1413 = vmatpush1.msra.mxu0 0.0
      %1414 = vmatprep.subr.mxu0 0.0
      %1415 = vmatpush1.msra.mxu0 0.0
      %1416 = vmatprep.subr.mxu0 0.0
      %1417 = vmatpush1.msra.mxu0 0.0
      %1418 = vmatprep.subr.mxu0 0.0
      %1419 = vmatpush1.msra.mxu0 0.0
      %1420 = vmatprep.subr.mxu0 0.0
      %1421 = vmatpush1.msra.mxu0 0.0
      %1422 = vmatprep.subr.mxu0 0.0
      %1423 = vmatpush1.msra.mxu0 0.0
      %1424 = vmatprep.subr.mxu0 0.0
      %1425 = vmatpush1.msra.mxu0 0.0
      %1426 = vmatprep.subr.mxu0 0.0
      %1427 = vmatpush1.msra.mxu0 0.0
      %1428 = vmatprep.subr.mxu0 0.0
      %1429 = vmatpush1.msra.mxu0 0.0
      %1430 = vmatprep.mubr.f32.mxu0 0.0
      %1431 = vmatmul.mubr.f32.gmra.mrb[0].mxu0 %v1358
      %v1432 = vpop.f32.mrb[0].mxu0
      %v1433 = vadd.f32 0.0, %v1432
      %v1434 = vpop.f32.mrb[0].mxu0
      %v1435 = vadd.f32 0.0, %v1434
      %1436 = vdwg.mxu0
      %1437 = vmatprep.subr.mxu0 0.0
      %1438 = vmatpush1.msra.mxu0 %v1364
      %1439 = vmatprep.subr.mxu0 0.0
      %1440 = vmatpush1.msra.mxu0 0.0
      %1441 = vmatprep.subr.mxu0 0.0
      %1442 = vmatpush1.msra.mxu0 0.0
      %1443 = vmatprep.subr.mxu0 0.0
      %1444 = vmatpush1.msra.mxu0 0.0
      %1445 = vmatprep.subr.mxu0 0.0
      %1446 = vmatpush1.msra.mxu0 0.0
      %1447 = vmatprep.subr.mxu0 0.0
      %1448 = vmatpush1.msra.mxu0 0.0
      %1449 = vmatprep.subr.mxu0 0.0
      %1450 = vmatpush1.msra.mxu0 0.0
      %1451 = vmatprep.subr.mxu0 0.0
      %1452 = vmatpush1.msra.mxu0 0.0
      %1453 = vmatprep.subr.mxu0 0.0
      %1454 = vmatpush1.msra.mxu0 0.0
      %1455 = vmatprep.subr.mxu0 0.0
      %1456 = vmatpush1.msra.mxu0 0.0
      %1457 = vmatprep.subr.mxu0 0.0
      %1458 = vmatpush1.msra.mxu0 0.0
      %1459 = vmatprep.subr.mxu0 0.0
      %1460 = vmatpush1.msra.mxu0 0.0
      %1461 = vmatprep.subr.mxu0 0.0
      %1462 = vmatpush1.msra.mxu0 0.0
      %1463 = vmatprep.subr.mxu0 0.0
      %1464 = vmatpush1.msra.mxu0 0.0
      %1465 = vmatprep.subr.mxu0 0.0
      %1466 = vmatpush1.msra.mxu0 0.0
      %1467 = vmatprep.subr.mxu0 0.0
      %1468 = vmatpush1.msra.mxu0 0.0
      %1469 = vmatprep.subr.mxu0 0.0
      %1470 = vmatpush1.msra.mxu0 0.0
      %1471 = vmatprep.subr.mxu0 0.0
      %1472 = vmatpush1.msra.mxu0 0.0
      %1473 = vmatprep.subr.mxu0 0.0
      %1474 = vmatpush1.msra.mxu0 0.0
      %1475 = vmatprep.subr.mxu0 0.0
      %1476 = vmatpush1.msra.mxu0 0.0
      %1477 = vmatprep.subr.mxu0 0.0
      %1478 = vmatpush1.msra.mxu0 0.0
      %1479 = vmatprep.subr.mxu0 0.0
      %1480 = vmatpush1.msra.mxu0 0.0
      %1481 = vmatprep.subr.mxu0 0.0
      %1482 = vmatpush1.msra.mxu0 0.0
      %1483 = vmatprep.subr.mxu0 0.0
      %1484 = vmatpush1.msra.mxu0 0.0
      %1485 = vmatprep.subr.mxu0 0.0
      %1486 = vmatpush1.msra.mxu0 0.0
      %1487 = vmatprep.subr.mxu0 0.0
      %1488 = vmatpush1.msra.mxu0 0.0
      %1489 = vmatprep.subr.mxu0 0.0
      %1490 = vmatpush1.msra.mxu0 0.0
      %1491 = vmatprep.subr.mxu0 0.0
      %1492 = vmatpush1.msra.mxu0 0.0
      %1493 = vmatprep.subr.mxu0 0.0
      %1494 = vmatpush1.msra.mxu0 0.0
      %1495 = vmatprep.subr.mxu0 0.0
      %1496 = vmatpush1.msra.mxu0 0.0
      %1497 = vmatprep.subr.mxu0 0.0
      %1498 = vmatpush1.msra.mxu0 0.0
      %1499 = vmatprep.subr.mxu0 0.0
      %1500 = vmatpush1.msra.mxu0 0.0
      %1501 = vmatprep.mubr.f32.mxu0 0.0
      %1502 = vmatmul.mubr.f32.gmra.mrb[0].mxu0 %v1358
      %v1503 = vpop.f32.mrb[0].mxu0
      %v1504 = vadd.f32 0.0, %v1503
      %v1505 = vpop.f32.mrb[0].mxu0
      %1506 = vdwg.mxu0
      %v1507 = vadd.f32 %v1340, %v1433
      %v1508 = vadd.f32 %v1341, %v1435
      %v1509 = vadd.f32 %v1342, %v1504
      %s1510 = scalar_lea.vmem %s1, 64
      %v1511 = vld [vmem:[%s1510] sm:$0xff]
      %1512 = vrot.lane.b32.xlu0 %v173, 90
      %v1513 = vpop.permute.xlu0 %1512
      %1514 = vrot.lane.b32.xlu0 %v184, 90
      %v1515 = vpop.permute.xlu0 %1514
      %1516 = vrot.lane.b32.xlu0 %v174, 90
      %v1517 = vpop.permute.xlu0 %1516
      %1518 = vrot.lane.b32.xlu0 %v342, 90
      %v1519 = vpop.permute.xlu0 %1518
      %vm1520 = vcmask 736256
      %v1521 = vsel %vm1520, %v1513, %v1515
      %v1522 = vsel %vm1520, %v1515, %v1517
      %v1523 = vsel %vm1520, %v1517, %v1519
      %v1525 = vsel %vm185, %v1511, 0
      %v1527 = vsel %vm189, %v1521, 0
      %v1529 = vsel %vm189, %v1522, 0
      %v1531 = vsel %vm189, %v1523, 0
      %1533 = vmatprep.subr.mxu0 %v1529
      %1534 = vmatpush1.msra.mxu0 %v1527
      %1535 = vmatprep.subr.mxu0 0.0
      %1536 = vmatpush1.msra.mxu0 0.0
      %1537 = vmatprep.subr.mxu0 0.0
      %1538 = vmatpush1.msra.mxu0 0.0
      %1539 = vmatprep.subr.mxu0 0.0
      %1540 = vmatpush1.msra.mxu0 0.0
      %1541 = vmatprep.subr.mxu0 0.0
      %1542 = vmatpush1.msra.mxu0 0.0
      %1543 = vmatprep.subr.mxu0 0.0
      %1544 = vmatpush1.msra.mxu0 0.0
      %1545 = vmatprep.subr.mxu0 0.0
      %1546 = vmatpush1.msra.mxu0 0.0
      %1547 = vmatprep.subr.mxu0 0.0
      %1548 = vmatpush1.msra.mxu0 0.0
      %1549 = vmatprep.subr.mxu0 0.0
      %1550 = vmatpush1.msra.mxu0 0.0
      %1551 = vmatprep.subr.mxu0 0.0
      %1552 = vmatpush1.msra.mxu0 0.0
      %1553 = vmatprep.subr.mxu0 0.0
      %1554 = vmatpush1.msra.mxu0 0.0
      %1555 = vmatprep.subr.mxu0 0.0
      %1556 = vmatpush1.msra.mxu0 0.0
      %1557 = vmatprep.subr.mxu0 0.0
      %1558 = vmatpush1.msra.mxu0 0.0
      %1559 = vmatprep.subr.mxu0 0.0
      %1560 = vmatpush1.msra.mxu0 0.0
      %1561 = vmatprep.subr.mxu0 0.0
      %1562 = vmatpush1.msra.mxu0 0.0
      %1563 = vmatprep.subr.mxu0 0.0
      %1564 = vmatpush1.msra.mxu0 0.0
      %1565 = vmatprep.subr.mxu0 0.0
      %1566 = vmatpush1.msra.mxu0 0.0
      %1567 = vmatprep.subr.mxu0 0.0
      %1568 = vmatpush1.msra.mxu0 0.0
      %1569 = vmatprep.subr.mxu0 0.0
      %1570 = vmatpush1.msra.mxu0 0.0
      %1571 = vmatprep.subr.mxu0 0.0
      %1572 = vmatpush1.msra.mxu0 0.0
      %1573 = vmatprep.subr.mxu0 0.0
      %1574 = vmatpush1.msra.mxu0 0.0
      %1575 = vmatprep.subr.mxu0 0.0
      %1576 = vmatpush1.msra.mxu0 0.0
      %1577 = vmatprep.subr.mxu0 0.0
      %1578 = vmatpush1.msra.mxu0 0.0
      %1579 = vmatprep.subr.mxu0 0.0
      %1580 = vmatpush1.msra.mxu0 0.0
      %1581 = vmatprep.subr.mxu0 0.0
      %1582 = vmatpush1.msra.mxu0 0.0
      %1583 = vmatprep.subr.mxu0 0.0
      %1584 = vmatpush1.msra.mxu0 0.0
      %1585 = vmatprep.subr.mxu0 0.0
      %1586 = vmatpush1.msra.mxu0 0.0
      %1587 = vmatprep.subr.mxu0 0.0
      %1588 = vmatpush1.msra.mxu0 0.0
      %1589 = vmatprep.subr.mxu0 0.0
      %1590 = vmatpush1.msra.mxu0 0.0
      %1591 = vmatprep.subr.mxu0 0.0
      %1592 = vmatpush1.msra.mxu0 0.0
      %1593 = vmatprep.subr.mxu0 0.0
      %1594 = vmatpush1.msra.mxu0 0.0
      %1595 = vmatprep.subr.mxu0 0.0
      %1596 = vmatpush1.msra.mxu0 0.0
      %1597 = vmatprep.mubr.f32.mxu0 0.0
      %1598 = vmatmul.mubr.f32.gmra.mrb[0].mxu0 %v1525
      %v1599 = vpop.f32.mrb[0].mxu0
      %v1600 = vadd.f32 0.0, %v1599
      %v1601 = vpop.f32.mrb[0].mxu0
      %v1602 = vadd.f32 0.0, %v1601
      %1603 = vdwg.mxu0
      %1604 = vmatprep.subr.mxu0 0.0
      %1605 = vmatpush1.msra.mxu0 %v1531
      %1606 = vmatprep.subr.mxu0 0.0
      %1607 = vmatpush1.msra.mxu0 0.0
      %1608 = vmatprep.subr.mxu0 0.0
      %1609 = vmatpush1.msra.mxu0 0.0
      %1610 = vmatprep.subr.mxu0 0.0
      %1611 = vmatpush1.msra.mxu0 0.0
      %1612 = vmatprep.subr.mxu0 0.0
      %1613 = vmatpush1.msra.mxu0 0.0
      %1614 = vmatprep.subr.mxu0 0.0
      %1615 = vmatpush1.msra.mxu0 0.0
      %1616 = vmatprep.subr.mxu0 0.0
      %1617 = vmatpush1.msra.mxu0 0.0
      %1618 = vmatprep.subr.mxu0 0.0
      %1619 = vmatpush1.msra.mxu0 0.0
      %1620 = vmatprep.subr.mxu0 0.0
      %1621 = vmatpush1.msra.mxu0 0.0
      %1622 = vmatprep.subr.mxu0 0.0
      %1623 = vmatpush1.msra.mxu0 0.0
      %1624 = vmatprep.subr.mxu0 0.0
      %1625 = vmatpush1.msra.mxu0 0.0
      %1626 = vmatprep.subr.mxu0 0.0
      %1627 = vmatpush1.msra.mxu0 0.0
      %1628 = vmatprep.subr.mxu0 0.0
      %1629 = vmatpush1.msra.mxu0 0.0
      %1630 = vmatprep.subr.mxu0 0.0
      %1631 = vmatpush1.msra.mxu0 0.0
      %1632 = vmatprep.subr.mxu0 0.0
      %1633 = vmatpush1.msra.mxu0 0.0
      %1634 = vmatprep.subr.mxu0 0.0
      %1635 = vmatpush1.msra.mxu0 0.0
      %1636 = vmatprep.subr.mxu0 0.0
      %1637 = vmatpush1.msra.mxu0 0.0
      %1638 = vmatprep.subr.mxu0 0.0
      %1639 = vmatpush1.msra.mxu0 0.0
      %1640 = vmatprep.subr.mxu0 0.0
      %1641 = vmatpush1.msra.mxu0 0.0
      %1642 = vmatprep.subr.mxu0 0.0
      %1643 = vmatpush1.msra.mxu0 0.0
      %1644 = vmatprep.subr.mxu0 0.0
      %1645 = vmatpush1.msra.mxu0 0.0
      %1646 = vmatprep.subr.mxu0 0.0
      %1647 = vmatpush1.msra.mxu0 0.0
      %1648 = vmatprep.subr.mxu0 0.0
      %1649 = vmatpush1.msra.mxu0 0.0
      %1650 = vmatprep.subr.mxu0 0.0
      %1651 = vmatpush1.msra.mxu0 0.0
      %1652 = vmatprep.subr.mxu0 0.0
      %1653 = vmatpush1.msra.mxu0 0.0
      %1654 = vmatprep.subr.mxu0 0.0
      %1655 = vmatpush1.msra.mxu0 0.0
      %1656 = vmatprep.subr.mxu0 0.0
      %1657 = vmatpush1.msra.mxu0 0.0
      %1658 = vmatprep.subr.mxu0 0.0
      %1659 = vmatpush1.msra.mxu0 0.0
      %1660 = vmatprep.subr.mxu0 0.0
      %1661 = vmatpush1.msra.mxu0 0.0
      %1662 = vmatprep.subr.mxu0 0.0
      %1663 = vmatpush1.msra.mxu0 0.0
      %1664 = vmatprep.subr.mxu0 0.0
      %1665 = vmatpush1.msra.mxu0 0.0
      %1666 = vmatprep.subr.mxu0 0.0
      %1667 = vmatpush1.msra.mxu0 0.0
      %1668 = vmatprep.mubr.f32.mxu0 0.0
      %1669 = vmatmul.mubr.f32.gmra.mrb[0].mxu0 %v1525
      %v1670 = vpop.f32.mrb[0].mxu0
      %v1671 = vadd.f32 0.0, %v1670
      %v1672 = vpop.f32.mrb[0].mxu0
      %1673 = vdwg.mxu0
      %v1674 = vadd.f32 %v1507, %v1600
      %v1675 = vadd.f32 %v1508, %v1602
      %v1676 = vadd.f32 %v1509, %v1671
      %1677 = vst [vmem:[%s170] sm:$0xff] %v1674
      %1678 = vst [vmem:[%s170 + $0x8] sm:$0xff] %v1675
      %1679 = vst [vmem:[%s170 + $0x10] sm:$0xff] %v1676
      %p1680 = scmp.lt.s32.totalorder %s14, 1
      %s1681 = scalar_select %p1680, %s14, 1
      %s1682 = smul.addr %s1681, 3
      %s1683 = smul.addr %s1682, 8
      %s1684 = scalar_lea.vmem %s3, %s1683
      // Predicated region
      $region33: #{a_call__.1} parent=31 // pred_check
        %p1685 = pneg %p100
      $region34: #{a_call__.1} parent=31 // pred_check_branch
        %1687 = sbr.rel (%p1685) target = $region36
      $region35: #{a_call__.1} parent=31 // pred_region
        _
      $region36: #{a_call__.1} parent=31 // pred_fallthru
        _
    $region32: #{a_call__.1} parent=5 // pred_fallthru
      _
    %p1688 = scmp.le.s32.totalorder 2, %s9
    // Predicated region
    $region37: #{a_call__.1} parent=5 // pred_check
      %p1689 = pneg %p1688
    $region38: #{a_call__.1} parent=5 // pred_check_branch
      %1691 = sbr.rel (%p1689) target = $region40
    $region39: #{a_call__.1} parent=5 // pred_region
      %s1692 = ssub.s32 %s9, 2
      // Predicated region
      $region41: #{a_call__.1} parent=39 // pred_check
        %p1693 = pneg %p106
      $region42: #{a_call__.1} parent=39 // pred_check_branch
        %1695 = sbr.rel (%p1693) target = $region44
      $region43: #{a_call__.1} parent=39 // pred_region
        %p1696 = scmp.lt.s32.totalorder %s15, 1
        %s1697 = scalar_select %p1696, %s15, 1
        %s1698 = smul.addr %s1697, 3
        %s1699 = smul.addr %s1698, 8
        %s1700 = scalar_lea.vmem %s3, %s1699
      $region44: #{a_call__.1} parent=39 // pred_fallthru
        _
    $region40: #{a_call__.1} parent=5 // pred_fallthru
      _
  $region6: #{a_call__.1} parent=0 // loop_footer
    %s13 = sadd.s32 1, %s9
  $region7: #{a_call__.1} parent=0 // loop_footer_branch
    %8 = sbr.rel target = $region3
  $region8: #{a_call__.1} parent=0 // loop_exit
    _

</llo_original>
